<compile_context>
chip_gen: v6e
topology: v6e:2x2x1
jax: 0.10.0
libtpu: 0.0.40
codegen_flags: <defaults>
</compile_context>

<pallas_src>
import functools

import jax
import jax.numpy as jnp
from jax.experimental import pallas as pl
from jax.experimental.pallas import tpu as pltpu


# ----------------------------------------------------------------------------
# Fused kernel: prediction heads + per-(batch, layer) top-k mask
#   grid = (num_layers,)  — one step per source-LLM layer (independent steps)
# ----------------------------------------------------------------------------
def _fused_heads_topk_kernel(k, x_ref, w1_ref, b1_ref, w2_ref, b2_ref, out_ref):
    """One grid step == one source-LLM layer.

    x:  (B, H)    bf16  last-token hidden states (resident across steps)
    w1: (H, 128)  bf16  prediction_head1 weight  (resident)
    b1: (1, 128)  f32
    w2: (128, F)  bf16  prediction_head2 weight column tile for this layer
    b2: (1, F)    f32
    out:(1, B, F) int8  selection-mask tile for this layer
    """
    # --- prediction heads: bf16 MXU matmuls, f32 accumulation + f32 bias -----
    h = jnp.dot(x_ref[...], w1_ref[...],
                preferred_element_type=jnp.float32) + b1_ref[...]       # (B,128)
    s = jnp.dot(h.astype(jnp.bfloat16), w2_ref[...],
                preferred_element_type=jnp.float32) + b2_ref[...]       # (B, F)

    # --- k-th largest per row: 32-pass radix select on the float bit pattern -
    # Map f32 -> int32 key whose *unsigned* bit ordering matches float order:
    #   bits >= 0 (non-negative float) -> bits | 0x80000000
    #   bits <  0 (negative float)     -> ~bits
    bits = pltpu.bitcast(s, jnp.int32)
    top_bit = jnp.int32(-2147483648)                                   # 0x80000000
    keys = jnp.where(bits < 0, ~bits, bits | top_bit)                  # (B, F) i32

    rows = s.shape[0]
    prefix = jnp.zeros((rows, 1), jnp.int32)   # known high bits of the k-th key
    kk = jnp.full((rows, 1), k, jnp.int32)     # remaining rank within the bucket
    for bit in range(31, -1, -1):              # static unroll: 32 cheap passes
        cur = top_bit if bit == 31 else jnp.int32(1 << bit)
        above = jnp.int32(0) if bit == 31 else jnp.int32(-(1 << (bit + 1)))
        in_bucket = (keys & above) == prefix            # high bits match prefix
        hit = in_bucket & ((keys & cur) != 0)           # ...and current bit set
        cnt = jnp.sum(hit.astype(jnp.int32), axis=1, keepdims=True)    # (B, 1)
        take = cnt >= kk                                # k-th largest has bit=1
        prefix = jnp.where(take, prefix | cur, prefix)
        kk = jnp.where(take, kk, kk - cnt)

    # prefix == exact key of the k-th largest score; map back to the f32 value
    thresh_bits = jnp.where(prefix < 0, prefix & jnp.int32(0x7FFFFFFF), ~prefix)
    thresh = pltpu.bitcast(thresh_bits, jnp.float32)                   # (B, 1)

    # ">= threshold keeps ties" — exactly the reference topk_operator semantics
    out_ref[0] = (s >= thresh).astype(jnp.int8)


def fused_heads_topk(x, w1, b1, w2, b2, *, num_layers, ffn_dim, topk):
    """(x @ w1 + b1) @ w2 + b2, then per-(batch, layer) top-k selection mask.

    Returns an int8 mask of shape (num_layers, B, ffn_dim).
    """
    B, H = x.shape
    D = w1.shape[1]                      # 128
    L, F = num_layers, ffn_dim
    assert w2.shape == (D, L * F)
    assert 1 <= topk <= F, "topk must be in [1, ffn_dim]"

    kernel = functools.partial(_fused_heads_topk_kernel, topk)
    return pl.pallas_call(
        kernel,
        out_shape=jax.ShapeDtypeStruct((L, B, F), jnp.int8),
        grid_spec=pltpu.PrefetchScalarGridSpec(
            num_scalar_prefetch=0,
            grid=(L,),                                    # one step per layer
            in_specs=[
                pl.BlockSpec((B, H), lambda l: (0, 0)),   # x   (resident)
                pl.BlockSpec((H, D), lambda l: (0, 0)),   # w1  (resident)
                pl.BlockSpec((1, D), lambda l: (0, 0)),   # b1  (resident)
                pl.BlockSpec((D, F), lambda l: (0, l)),   # w2 column tile (streamed)
                pl.BlockSpec((1, F), lambda l: (0, l)),   # b2 tile
            ],
            out_specs=pl.BlockSpec((1, B, F), lambda l: (l, 0, 0)),
        ),
        compiler_params=pltpu.CompilerParams(
            # layer steps are independent -> both v7x TensorCores get work
            dimension_semantics=("parallel",)),
    )(x.astype(jnp.bfloat16),
      w1.astype(jnp.bfloat16),
      b1.reshape(1, D).astype(jnp.float32),
      w2.astype(jnp.bfloat16),
      b2.reshape(1, L * F).astype(jnp.float32))


# ----------------------------------------------------------------------------
# Full forward pass (glue in plain JAX around the fused Pallas kernel)
# ----------------------------------------------------------------------------
def sparsity_predictor_forward(input_ids, params, *, num_layers, ffn_dim,
                               padding_idx, topk):
    # TODO(synk): the Qwen2ForCausalLM feature extractor (a full pretrained LLM)
    # has no clean Pallas equivalent; it is replaced here by a deterministic
    # bf16 embedding lookup producing hidden_states of shape [B, S, H].
    emb = params["embedding"]                                  # (vocab, H) bf16
    hidden_states = emb[input_ids]                             # (B, S, H) bf16

    non_pad = input_ids != padding_idx
    last_non_pad = jnp.sum(non_pad.astype(jnp.int32), axis=1) - 1
    B = input_ids.shape[0]
    last_hidden = hidden_states[jnp.arange(B), last_non_pad, :]    # (B, H) bf16

    mask_lbf = fused_heads_topk(last_hidden, params["w1"], params["b1"],
                                params["w2"], params["b2"],
                                num_layers=num_layers, ffn_dim=ffn_dim,
                                topk=topk)                     # (L, B, F) int8
    return jnp.transpose(mask_lbf, (1, 0, 2)).astype(jnp.bool_)  # (B, L, F) bool


if __name__ == "__main__":
    # Small shapes consistent with the module's forward.
    B, S = 2, 8
    H = 32                 # feature-extractor hidden size
    num_layers = 4         # source-LLM layers
    ffn_dim = 256          # source-LLM FFN dim
    vocab = 16
    padding_idx = 0
    topk = 64              # k for the top-k operator (<= ffn_dim)

    key = jax.random.PRNGKey(0)
    k_emb, k_w1, k_b1, k_w2, k_b2, k_ids = jax.random.split(key, 6)
    params = {
        "embedding": (0.02 * jax.random.normal(k_emb, (vocab, H), jnp.float32)
                      ).astype(jnp.bfloat16),
        "w1": 0.02 * jax.random.normal(k_w1, (H, 128), jnp.float32),
        "b1": 0.02 * jax.random.normal(k_b1, (128,), jnp.float32),
        "w2": 0.02 * jax.random.normal(k_w2, (128, num_layers * ffn_dim), jnp.float32),
        "b2": 0.02 * jax.random.normal(k_b2, (num_layers * ffn_dim,), jnp.float32),
    }

    input_ids = jax.random.randint(k_ids, (B, S), 1, vocab)
    # right-pad with padding_idx so the last-non-pad selection is exercised
    input_ids = input_ids.at[0, 6:].set(padding_idx)
    input_ids = input_ids.at[1, 7:].set(padding_idx)

    mask = sparsity_predictor_forward(
        input_ids, params,
        num_layers=num_layers, ffn_dim=ffn_dim,
        padding_idx=padding_idx, topk=topk)
    mask = jax.block_until_ready(mask)

    # ---- structural checks ---------------------------------------------------
    assert mask.shape == (B, num_layers, ffn_dim)
    assert mask.dtype == jnp.bool_
    # each (batch, layer) row keeps at least k entries (> k only via value ties)
    assert bool(jnp.all(jnp.sum(mask, axis=-1) >= topk))

    # ---- pure-JAX f32 reference (kernel matmuls are bf16; allow a few
    #      boundary flips from the precision difference) -----------------------
    emb_f32 = params["embedding"].astype(jnp.float32)
    hs = emb_f32[input_ids]
    last_idx = jnp.sum((input_ids != padding_idx).astype(jnp.int32), axis=1) - 1
    lh = hs[jnp.arange(B), last_idx, :]
    preds = (lh @ params["w1"] + params["b1"]) @ params["w2"] + params["b2"]
    scores = preds.reshape(B * num_layers, ffn_dim)
    thr = jax.lax.top_k(scores, topk)[0][:, -1:]
    mask_ref = (scores >= thr).reshape(B, num_layers, ffn_dim)
    mismatches = int(jnp.sum(mask != mask_ref))
    assert mismatches <= 2 * B * num_layers, f"too many mismatches: {mismatches}"

    print("KERNEL_OK")
</pallas_src>

<mosaic_0001>
module attributes {stable_mosaic.version = 11 : i64} {
  func.func @_fused_heads_topk_kernel(%arg0: i32, %arg1: memref<2x32xbf16, #tpu.memory_space<vmem>>, %arg2: memref<32x128xbf16, #tpu.memory_space<vmem>>, %arg3: memref<1x128xf32, #tpu.memory_space<vmem>>, %arg4: memref<128x256xbf16, #tpu.memory_space<vmem>>, %arg5: memref<1x256xf32, #tpu.memory_space<vmem>>, %arg6: memref<1x2x256xi8, #tpu.memory_space<vmem>>) attributes {dimension_semantics = [#tpu.dimension_semantics<parallel>], iteration_bounds = array<i64: 4>, scalar_prefetch = 0 : i64, scratch_operands = 0 : i64, tpu.core_type = #tpu.core_type<tc>, window_params = [{pipeline_mode = #tpu.pipeline_mode<synchronous>, transform_indices = @transform_0, window_bounds = array<i64: 2, 32>}, {pipeline_mode = #tpu.pipeline_mode<synchronous>, transform_indices = @transform_1, window_bounds = array<i64: 32, 128>}, {pipeline_mode = #tpu.pipeline_mode<synchronous>, transform_indices = @transform_2, window_bounds = array<i64: 1, 128>}, {transform_indices = @transform_3, window_bounds = array<i64: 128, 256>}, {transform_indices = @transform_4, window_bounds = array<i64: 1, 256>}, {transform_indices = @transform_5, window_bounds = array<i64: 1, 2, 256>}]} {
    %c0 = arith.constant 0 : index
    %c0_0 = arith.constant 0 : index
    %0 = vector.load %arg1[%c0, %c0_0] : memref<2x32xbf16, #tpu.memory_space<vmem>>, vector<2x32xbf16>
    %c0_1 = arith.constant 0 : index
    %c0_2 = arith.constant 0 : index
    %1 = vector.load %arg2[%c0_1, %c0_2] : memref<32x128xbf16, #tpu.memory_space<vmem>>, vector<32x128xbf16>
    %cst = arith.constant dense<0.000000e+00> : vector<2x128xf32>
    %2 = tpu.matmul %0, %1, %cst {dimension_numbers = #tpu.dot_dimension_numbers<[1], [0], [0], [1], [0, 0, 1, 1], [], []>} : vector<2x32xbf16>, vector<32x128xbf16>, vector<2x128xf32> -> vector<2x128xf32>
    %c0_3 = arith.constant 0 : index
    %c0_4 = arith.constant 0 : index
    %3 = vector.load %arg3[%c0_3, %c0_4] : memref<1x128xf32, #tpu.memory_space<vmem>>, vector<1x128xf32>
    %4 = vector.broadcast %3 : vector<1x128xf32> to vector<2x128xf32>
    %5 = arith.addf %2, %4 : vector<2x128xf32>
    %6 = arith.truncf %5 : vector<2x128xf32> to vector<2x128xbf16>
    %c0_5 = arith.constant 0 : index
    %c0_6 = arith.constant 0 : index
    %7 = vector.load %arg4[%c0_5, %c0_6] : memref<128x256xbf16, #tpu.memory_space<vmem>>, vector<128x256xbf16>
    %cst_7 = arith.constant dense<0.000000e+00> : vector<2x256xf32>
    %8 = tpu.matmul %6, %7, %cst_7 {dimension_numbers = #tpu.dot_dimension_numbers<[1], [0], [0], [1], [0, 0, 1, 1], [], []>} : vector<2x128xbf16>, vector<128x256xbf16>, vector<2x256xf32> -> vector<2x256xf32>
    %c0_8 = arith.constant 0 : index
    %c0_9 = arith.constant 0 : index
    %9 = vector.load %arg5[%c0_8, %c0_9] : memref<1x256xf32, #tpu.memory_space<vmem>>, vector<1x256xf32>
    %10 = vector.broadcast %9 : vector<1x256xf32> to vector<2x256xf32>
    %11 = arith.addf %8, %10 : vector<2x256xf32>
    %12 = tpu.bitcast %11 : vector<2x256xf32> -> vector<2x256xi32>
    %c0_i32 = arith.constant 0 : i32
    %13 = vector.broadcast %c0_i32 : i32 to vector<2x256xi32>
    %14 = arith.cmpi slt, %12, %13 : vector<2x256xi32>
    %cst_10 = arith.constant dense<-1> : vector<2x256xi32>
    %15 = arith.xori %12, %cst_10 : vector<2x256xi32>
    %c-2147483648_i32 = arith.constant -2147483648 : i32
    %16 = vector.broadcast %c-2147483648_i32 : i32 to vector<2x256xi32>
    %17 = arith.ori %12, %16 : vector<2x256xi32>
    %18 = arith.select %14, %15, %17 : vector<2x256xi1>, vector<2x256xi32>
    %c0_i32_11 = arith.constant 0 : i32
    %19 = vector.broadcast %c0_i32_11 : i32 to vector<2x1xi32>
    %c64_i32 = arith.constant 64 : i32
    %20 = vector.broadcast %c64_i32 : i32 to vector<2x1xi32>
    %c0_i32_12 = arith.constant 0 : i32
    %21 = vector.broadcast %c0_i32_12 : i32 to vector<2x256xi32>
    %22 = arith.andi %18, %21 : vector<2x256xi32>
    %23 = vector.broadcast %19 : vector<2x1xi32> to vector<2x256xi32>
    %24 = arith.cmpi eq, %22, %23 : vector<2x256xi32>
    %c-2147483648_i32_13 = arith.constant -2147483648 : i32
    %25 = vector.broadcast %c-2147483648_i32_13 : i32 to vector<2x256xi32>
    %26 = arith.andi %18, %25 : vector<2x256xi32>
    %c0_i32_14 = arith.constant 0 : i32
    %27 = vector.broadcast %c0_i32_14 : i32 to vector<2x256xi32>
    %28 = arith.cmpi ne, %26, %27 : vector<2x256xi32>
    %29 = arith.andi %24, %28 : vector<2x256xi1>
    %30 = arith.extui %29 : vector<2x256xi1> to vector<2x256xi32>
    %cst_15 = arith.constant dense<0> : vector<2xi32>
    %31 = vector.multi_reduction <add>, %30, %cst_15 [1] : vector<2x256xi32> to vector<2xi32>
    %32 = vector.shape_cast %31 : vector<2xi32> to vector<2x1xi32>
    %33 = arith.cmpi sge, %32, %20 : vector<2x1xi32>
    %c-2147483648_i32_16 = arith.constant -2147483648 : i32
    %34 = vector.broadcast %c-2147483648_i32_16 : i32 to vector<2x1xi32>
    %35 = arith.ori %19, %34 : vector<2x1xi32>
    %36 = arith.select %33, %35, %19 : vector<2x1xi1>, vector<2x1xi32>
    %37 = arith.subi %20, %32 : vector<2x1xi32>
    %38 = arith.select %33, %20, %37 : vector<2x1xi1>, vector<2x1xi32>
    %c-2147483648_i32_17 = arith.constant -2147483648 : i32
    %39 = vector.broadcast %c-2147483648_i32_17 : i32 to vector<2x256xi32>
    %40 = arith.andi %18, %39 : vector<2x256xi32>
    %41 = vector.broadcast %36 : vector<2x1xi32> to vector<2x256xi32>
    %42 = arith.cmpi eq, %40, %41 : vector<2x256xi32>
    %c1073741824_i32 = arith.constant 1073741824 : i32
    %43 = vector.broadcast %c1073741824_i32 : i32 to vector<2x256xi32>
    %44 = arith.andi %18, %43 : vector<2x256xi32>
    %c0_i32_18 = arith.constant 0 : i32
    %45 = vector.broadcast %c0_i32_18 : i32 to vector<2x256xi32>
    %46 = arith.cmpi ne, %44, %45 : vector<2x256xi32>
    %47 = arith.andi %42, %46 : vector<2x256xi1>
    %48 = arith.extui %47 : vector<2x256xi1> to vector<2x256xi32>
    %cst_19 = arith.constant dense<0> : vector<2xi32>
    %49 = vector.multi_reduction <add>, %48, %cst_19 [1] : vector<2x256xi32> to vector<2xi32>
    %50 = vector.shape_cast %49 : vector<2xi32> to vector<2x1xi32>
    %51 = arith.cmpi sge, %50, %38 : vector<2x1xi32>
    %c1073741824_i32_20 = arith.constant 1073741824 : i32
    %52 = vector.broadcast %c1073741824_i32_20 : i32 to vector<2x1xi32>
    %53 = arith.ori %36, %52 : vector<2x1xi32>
    %54 = arith.select %51, %53, %36 : vector<2x1xi1>, vector<2x1xi32>
    %55 = arith.subi %38, %50 : vector<2x1xi32>
    %56 = arith.select %51, %38, %55 : vector<2x1xi1>, vector<2x1xi32>
    %c-1073741824_i32 = arith.constant -1073741824 : i32
    %57 = vector.broadcast %c-1073741824_i32 : i32 to vector<2x256xi32>
    %58 = arith.andi %18, %57 : vector<2x256xi32>
    %59 = vector.broadcast %54 : vector<2x1xi32> to vector<2x256xi32>
    %60 = arith.cmpi eq, %58, %59 : vector<2x256xi32>
    %c536870912_i32 = arith.constant 536870912 : i32
    %61 = vector.broadcast %c536870912_i32 : i32 to vector<2x256xi32>
    %62 = arith.andi %18, %61 : vector<2x256xi32>
    %c0_i32_21 = arith.constant 0 : i32
    %63 = vector.broadcast %c0_i32_21 : i32 to vector<2x256xi32>
    %64 = arith.cmpi ne, %62, %63 : vector<2x256xi32>
    %65 = arith.andi %60, %64 : vector<2x256xi1>
    %66 = arith.extui %65 : vector<2x256xi1> to vector<2x256xi32>
    %cst_22 = arith.constant dense<0> : vector<2xi32>
    %67 = vector.multi_reduction <add>, %66, %cst_22 [1] : vector<2x256xi32> to vector<2xi32>
    %68 = vector.shape_cast %67 : vector<2xi32> to vector<2x1xi32>
    %69 = arith.cmpi sge, %68, %56 : vector<2x1xi32>
    %c536870912_i32_23 = arith.constant 536870912 : i32
    %70 = vector.broadcast %c536870912_i32_23 : i32 to vector<2x1xi32>
    %71 = arith.ori %54, %70 : vector<2x1xi32>
    %72 = arith.select %69, %71, %54 : vector<2x1xi1>, vector<2x1xi32>
    %73 = arith.subi %56, %68 : vector<2x1xi32>
    %74 = arith.select %69, %56, %73 : vector<2x1xi1>, vector<2x1xi32>
    %c-536870912_i32 = arith.constant -536870912 : i32
    %75 = vector.broadcast %c-536870912_i32 : i32 to vector<2x256xi32>
    %76 = arith.andi %18, %75 : vector<2x256xi32>
    %77 = vector.broadcast %72 : vector<2x1xi32> to vector<2x256xi32>
    %78 = arith.cmpi eq, %76, %77 : vector<2x256xi32>
    %c268435456_i32 = arith.constant 268435456 : i32
    %79 = vector.broadcast %c268435456_i32 : i32 to vector<2x256xi32>
    %80 = arith.andi %18, %79 : vector<2x256xi32>
    %c0_i32_24 = arith.constant 0 : i32
    %81 = vector.broadcast %c0_i32_24 : i32 to vector<2x256xi32>
    %82 = arith.cmpi ne, %80, %81 : vector<2x256xi32>
    %83 = arith.andi %78, %82 : vector<2x256xi1>
    %84 = arith.extui %83 : vector<2x256xi1> to vector<2x256xi32>
    %cst_25 = arith.constant dense<0> : vector<2xi32>
    %85 = vector.multi_reduction <add>, %84, %cst_25 [1] : vector<2x256xi32> to vector<2xi32>
    %86 = vector.shape_cast %85 : vector<2xi32> to vector<2x1xi32>
    %87 = arith.cmpi sge, %86, %74 : vector<2x1xi32>
    %c268435456_i32_26 = arith.constant 268435456 : i32
    %88 = vector.broadcast %c268435456_i32_26 : i32 to vector<2x1xi32>
    %89 = arith.ori %72, %88 : vector<2x1xi32>
    %90 = arith.select %87, %89, %72 : vector<2x1xi1>, vector<2x1xi32>
    %91 = arith.subi %74, %86 : vector<2x1xi32>
    %92 = arith.select %87, %74, %91 : vector<2x1xi1>, vector<2x1xi32>
    %c-268435456_i32 = arith.constant -268435456 : i32
    %93 = vector.broadcast %c-268435456_i32 : i32 to vector<2x256xi32>
    %94 = arith.andi %18, %93 : vector<2x256xi32>
    %95 = vector.broadcast %90 : vector<2x1xi32> to vector<2x256xi32>
    %96 = arith.cmpi eq, %94, %95 : vector<2x256xi32>
    %c134217728_i32 = arith.constant 134217728 : i32
    %97 = vector.broadcast %c134217728_i32 : i32 to vector<2x256xi32>
    %98 = arith.andi %18, %97 : vector<2x256xi32>
    %c0_i32_27 = arith.constant 0 : i32
    %99 = vector.broadcast %c0_i32_27 : i32 to vector<2x256xi32>
    %100 = arith.cmpi ne, %98, %99 : vector<2x256xi32>
    %101 = arith.andi %96, %100 : vector<2x256xi1>
    %102 = arith.extui %101 : vector<2x256xi1> to vector<2x256xi32>
    %cst_28 = arith.constant dense<0> : vector<2xi32>
    %103 = vector.multi_reduction <add>, %102, %cst_28 [1] : vector<2x256xi32> to vector<2xi32>
    %104 = vector.shape_cast %103 : vector<2xi32> to vector<2x1xi32>
    %105 = arith.cmpi sge, %104, %92 : vector<2x1xi32>
    %c134217728_i32_29 = arith.constant 134217728 : i32
    %106 = vector.broadcast %c134217728_i32_29 : i32 to vector<2x1xi32>
    %107 = arith.ori %90, %106 : vector<2x1xi32>
    %108 = arith.select %105, %107, %90 : vector<2x1xi1>, vector<2x1xi32>
    %109 = arith.subi %92, %104 : vector<2x1xi32>
    %110 = arith.select %105, %92, %109 : vector<2x1xi1>, vector<2x1xi32>
    %c-134217728_i32 = arith.constant -134217728 : i32
    %111 = vector.broadcast %c-134217728_i32 : i32 to vector<2x256xi32>
    %112 = arith.andi %18, %111 : vector<2x256xi32>
    %113 = vector.broadcast %108 : vector<2x1xi32> to vector<2x256xi32>
    %114 = arith.cmpi eq, %112, %113 : vector<2x256xi32>
    %c67108864_i32 = arith.constant 67108864 : i32
    %115 = vector.broadcast %c67108864_i32 : i32 to vector<2x256xi32>
    %116 = arith.andi %18, %115 : vector<2x256xi32>
    %c0_i32_30 = arith.constant 0 : i32
    %117 = vector.broadcast %c0_i32_30 : i32 to vector<2x256xi32>
    %118 = arith.cmpi ne, %116, %117 : vector<2x256xi32>
    %119 = arith.andi %114, %118 : vector<2x256xi1>
    %120 = arith.extui %119 : vector<2x256xi1> to vector<2x256xi32>
    %cst_31 = arith.constant dense<0> : vector<2xi32>
    %121 = vector.multi_reduction <add>, %120, %cst_31 [1] : vector<2x256xi32> to vector<2xi32>
    %122 = vector.shape_cast %121 : vector<2xi32> to vector<2x1xi32>
    %123 = arith.cmpi sge, %122, %110 : vector<2x1xi32>
    %c67108864_i32_32 = arith.constant 67108864 : i32
    %124 = vector.broadcast %c67108864_i32_32 : i32 to vector<2x1xi32>
    %125 = arith.ori %108, %124 : vector<2x1xi32>
    %126 = arith.select %123, %125, %108 : vector<2x1xi1>, vector<2x1xi32>
    %127 = arith.subi %110, %122 : vector<2x1xi32>
    %128 = arith.select %123, %110, %127 : vector<2x1xi1>, vector<2x1xi32>
    %c-67108864_i32 = arith.constant -67108864 : i32
    %129 = vector.broadcast %c-67108864_i32 : i32 to vector<2x256xi32>
    %130 = arith.andi %18, %129 : vector<2x256xi32>
    %131 = vector.broadcast %126 : vector<2x1xi32> to vector<2x256xi32>
    %132 = arith.cmpi eq, %130, %131 : vector<2x256xi32>
    %c33554432_i32 = arith.constant 33554432 : i32
    %133 = vector.broadcast %c33554432_i32 : i32 to vector<2x256xi32>
    %134 = arith.andi %18, %133 : vector<2x256xi32>
    %c0_i32_33 = arith.constant 0 : i32
    %135 = vector.broadcast %c0_i32_33 : i32 to vector<2x256xi32>
    %136 = arith.cmpi ne, %134, %135 : vector<2x256xi32>
    %137 = arith.andi %132, %136 : vector<2x256xi1>
    %138 = arith.extui %137 : vector<2x256xi1> to vector<2x256xi32>
    %cst_34 = arith.constant dense<0> : vector<2xi32>
    %139 = vector.multi_reduction <add>, %138, %cst_34 [1] : vector<2x256xi32> to vector<2xi32>
    %140 = vector.shape_cast %139 : vector<2xi32> to vector<2x1xi32>
    %141 = arith.cmpi sge, %140, %128 : vector<2x1xi32>
    %c33554432_i32_35 = arith.constant 33554432 : i32
    %142 = vector.broadcast %c33554432_i32_35 : i32 to vector<2x1xi32>
    %143 = arith.ori %126, %142 : vector<2x1xi32>
    %144 = arith.select %141, %143, %126 : vector<2x1xi1>, vector<2x1xi32>
    %145 = arith.subi %128, %140 : vector<2x1xi32>
    %146 = arith.select %141, %128, %145 : vector<2x1xi1>, vector<2x1xi32>
    %c-33554432_i32 = arith.constant -33554432 : i32
    %147 = vector.broadcast %c-33554432_i32 : i32 to vector<2x256xi32>
    %148 = arith.andi %18, %147 : vector<2x256xi32>
    %149 = vector.broadcast %144 : vector<2x1xi32> to vector<2x256xi32>
    %150 = arith.cmpi eq, %148, %149 : vector<2x256xi32>
    %c16777216_i32 = arith.constant 16777216 : i32
    %151 = vector.broadcast %c16777216_i32 : i32 to vector<2x256xi32>
    %152 = arith.andi %18, %151 : vector<2x256xi32>
    %c0_i32_36 = arith.constant 0 : i32
    %153 = vector.broadcast %c0_i32_36 : i32 to vector<2x256xi32>
    %154 = arith.cmpi ne, %152, %153 : vector<2x256xi32>
    %155 = arith.andi %150, %154 : vector<2x256xi1>
    %156 = arith.extui %155 : vector<2x256xi1> to vector<2x256xi32>
    %cst_37 = arith.constant dense<0> : vector<2xi32>
    %157 = vector.multi_reduction <add>, %156, %cst_37 [1] : vector<2x256xi32> to vector<2xi32>
    %158 = vector.shape_cast %157 : vector<2xi32> to vector<2x1xi32>
    %159 = arith.cmpi sge, %158, %146 : vector<2x1xi32>
    %c16777216_i32_38 = arith.constant 16777216 : i32
    %160 = vector.broadcast %c16777216_i32_38 : i32 to vector<2x1xi32>
    %161 = arith.ori %144, %160 : vector<2x1xi32>
    %162 = arith.select %159, %161, %144 : vector<2x1xi1>, vector<2x1xi32>
    %163 = arith.subi %146, %158 : vector<2x1xi32>
    %164 = arith.select %159, %146, %163 : vector<2x1xi1>, vector<2x1xi32>
    %c-16777216_i32 = arith.constant -16777216 : i32
    %165 = vector.broadcast %c-16777216_i32 : i32 to vector<2x256xi32>
    %166 = arith.andi %18, %165 : vector<2x256xi32>
    %167 = vector.broadcast %162 : vector<2x1xi32> to vector<2x256xi32>
    %168 = arith.cmpi eq, %166, %167 : vector<2x256xi32>
    %c8388608_i32 = arith.constant 8388608 : i32
    %169 = vector.broadcast %c8388608_i32 : i32 to vector<2x256xi32>
    %170 = arith.andi %18, %169 : vector<2x256xi32>
    %c0_i32_39 = arith.constant 0 : i32
    %171 = vector.broadcast %c0_i32_39 : i32 to vector<2x256xi32>
    %172 = arith.cmpi ne, %170, %171 : vector<2x256xi32>
    %173 = arith.andi %168, %172 : vector<2x256xi1>
    %174 = arith.extui %173 : vector<2x256xi1> to vector<2x256xi32>
    %cst_40 = arith.constant dense<0> : vector<2xi32>
    %175 = vector.multi_reduction <add>, %174, %cst_40 [1] : vector<2x256xi32> to vector<2xi32>
    %176 = vector.shape_cast %175 : vector<2xi32> to vector<2x1xi32>
    %177 = arith.cmpi sge, %176, %164 : vector<2x1xi32>
    %c8388608_i32_41 = arith.constant 8388608 : i32
    %178 = vector.broadcast %c8388608_i32_41 : i32 to vector<2x1xi32>
    %179 = arith.ori %162, %178 : vector<2x1xi32>
    %180 = arith.select %177, %179, %162 : vector<2x1xi1>, vector<2x1xi32>
    %181 = arith.subi %164, %176 : vector<2x1xi32>
    %182 = arith.select %177, %164, %181 : vector<2x1xi1>, vector<2x1xi32>
    %c-8388608_i32 = arith.constant -8388608 : i32
    %183 = vector.broadcast %c-8388608_i32 : i32 to vector<2x256xi32>
    %184 = arith.andi %18, %183 : vector<2x256xi32>
    %185 = vector.broadcast %180 : vector<2x1xi32> to vector<2x256xi32>
    %186 = arith.cmpi eq, %184, %185 : vector<2x256xi32>
    %c4194304_i32 = arith.constant 4194304 : i32
    %187 = vector.broadcast %c4194304_i32 : i32 to vector<2x256xi32>
    %188 = arith.andi %18, %187 : vector<2x256xi32>
    %c0_i32_42 = arith.constant 0 : i32
    %189 = vector.broadcast %c0_i32_42 : i32 to vector<2x256xi32>
    %190 = arith.cmpi ne, %188, %189 : vector<2x256xi32>
    %191 = arith.andi %186, %190 : vector<2x256xi1>
    %192 = arith.extui %191 : vector<2x256xi1> to vector<2x256xi32>
    %cst_43 = arith.constant dense<0> : vector<2xi32>
    %193 = vector.multi_reduction <add>, %192, %cst_43 [1] : vector<2x256xi32> to vector<2xi32>
    %194 = vector.shape_cast %193 : vector<2xi32> to vector<2x1xi32>
    %195 = arith.cmpi sge, %194, %182 : vector<2x1xi32>
    %c4194304_i32_44 = arith.constant 4194304 : i32
    %196 = vector.broadcast %c4194304_i32_44 : i32 to vector<2x1xi32>
    %197 = arith.ori %180, %196 : vector<2x1xi32>
    %198 = arith.select %195, %197, %180 : vector<2x1xi1>, vector<2x1xi32>
    %199 = arith.subi %182, %194 : vector<2x1xi32>
    %200 = arith.select %195, %182, %199 : vector<2x1xi1>, vector<2x1xi32>
    %c-4194304_i32 = arith.constant -4194304 : i32
    %201 = vector.broadcast %c-4194304_i32 : i32 to vector<2x256xi32>
    %202 = arith.andi %18, %201 : vector<2x256xi32>
    %203 = vector.broadcast %198 : vector<2x1xi32> to vector<2x256xi32>
    %204 = arith.cmpi eq, %202, %203 : vector<2x256xi32>
    %c2097152_i32 = arith.constant 2097152 : i32
    %205 = vector.broadcast %c2097152_i32 : i32 to vector<2x256xi32>
    %206 = arith.andi %18, %205 : vector<2x256xi32>
    %c0_i32_45 = arith.constant 0 : i32
    %207 = vector.broadcast %c0_i32_45 : i32 to vector<2x256xi32>
    %208 = arith.cmpi ne, %206, %207 : vector<2x256xi32>
    %209 = arith.andi %204, %208 : vector<2x256xi1>
    %210 = arith.extui %209 : vector<2x256xi1> to vector<2x256xi32>
    %cst_46 = arith.constant dense<0> : vector<2xi32>
    %211 = vector.multi_reduction <add>, %210, %cst_46 [1] : vector<2x256xi32> to vector<2xi32>
    %212 = vector.shape_cast %211 : vector<2xi32> to vector<2x1xi32>
    %213 = arith.cmpi sge, %212, %200 : vector<2x1xi32>
    %c2097152_i32_47 = arith.constant 2097152 : i32
    %214 = vector.broadcast %c2097152_i32_47 : i32 to vector<2x1xi32>
    %215 = arith.ori %198, %214 : vector<2x1xi32>
    %216 = arith.select %213, %215, %198 : vector<2x1xi1>, vector<2x1xi32>
    %217 = arith.subi %200, %212 : vector<2x1xi32>
    %218 = arith.select %213, %200, %217 : vector<2x1xi1>, vector<2x1xi32>
    %c-2097152_i32 = arith.constant -2097152 : i32
    %219 = vector.broadcast %c-2097152_i32 : i32 to vector<2x256xi32>
    %220 = arith.andi %18, %219 : vector<2x256xi32>
    %221 = vector.broadcast %216 : vector<2x1xi32> to vector<2x256xi32>
    %222 = arith.cmpi eq, %220, %221 : vector<2x256xi32>
    %c1048576_i32 = arith.constant 1048576 : i32
    %223 = vector.broadcast %c1048576_i32 : i32 to vector<2x256xi32>
    %224 = arith.andi %18, %223 : vector<2x256xi32>
    %c0_i32_48 = arith.constant 0 : i32
    %225 = vector.broadcast %c0_i32_48 : i32 to vector<2x256xi32>
    %226 = arith.cmpi ne, %224, %225 : vector<2x256xi32>
    %227 = arith.andi %222, %226 : vector<2x256xi1>
    %228 = arith.extui %227 : vector<2x256xi1> to vector<2x256xi32>
    %cst_49 = arith.constant dense<0> : vector<2xi32>
    %229 = vector.multi_reduction <add>, %228, %cst_49 [1] : vector<2x256xi32> to vector<2xi32>
    %230 = vector.shape_cast %229 : vector<2xi32> to vector<2x1xi32>
    %231 = arith.cmpi sge, %230, %218 : vector<2x1xi32>
    %c1048576_i32_50 = arith.constant 1048576 : i32
    %232 = vector.broadcast %c1048576_i32_50 : i32 to vector<2x1xi32>
    %233 = arith.ori %216, %232 : vector<2x1xi32>
    %234 = arith.select %231, %233, %216 : vector<2x1xi1>, vector<2x1xi32>
    %235 = arith.subi %218, %230 : vector<2x1xi32>
    %236 = arith.select %231, %218, %235 : vector<2x1xi1>, vector<2x1xi32>
    %c-1048576_i32 = arith.constant -1048576 : i32
    %237 = vector.broadcast %c-1048576_i32 : i32 to vector<2x256xi32>
    %238 = arith.andi %18, %237 : vector<2x256xi32>
    %239 = vector.broadcast %234 : vector<2x1xi32> to vector<2x256xi32>
    %240 = arith.cmpi eq, %238, %239 : vector<2x256xi32>
    %c524288_i32 = arith.constant 524288 : i32
    %241 = vector.broadcast %c524288_i32 : i32 to vector<2x256xi32>
    %242 = arith.andi %18, %241 : vector<2x256xi32>
    %c0_i32_51 = arith.constant 0 : i32
    %243 = vector.broadcast %c0_i32_51 : i32 to vector<2x256xi32>
    %244 = arith.cmpi ne, %242, %243 : vector<2x256xi32>
    %245 = arith.andi %240, %244 : vector<2x256xi1>
    %246 = arith.extui %245 : vector<2x256xi1> to vector<2x256xi32>
    %cst_52 = arith.constant dense<0> : vector<2xi32>
    %247 = vector.multi_reduction <add>, %246, %cst_52 [1] : vector<2x256xi32> to vector<2xi32>
    %248 = vector.shape_cast %247 : vector<2xi32> to vector<2x1xi32>
    %249 = arith.cmpi sge, %248, %236 : vector<2x1xi32>
    %c524288_i32_53 = arith.constant 524288 : i32
    %250 = vector.broadcast %c524288_i32_53 : i32 to vector<2x1xi32>
    %251 = arith.ori %234, %250 : vector<2x1xi32>
    %252 = arith.select %249, %251, %234 : vector<2x1xi1>, vector<2x1xi32>
    %253 = arith.subi %236, %248 : vector<2x1xi32>
    %254 = arith.select %249, %236, %253 : vector<2x1xi1>, vector<2x1xi32>
    %c-524288_i32 = arith.constant -524288 : i32
    %255 = vector.broadcast %c-524288_i32 : i32 to vector<2x256xi32>
    %256 = arith.andi %18, %255 : vector<2x256xi32>
    %257 = vector.broadcast %252 : vector<2x1xi32> to vector<2x256xi32>
    %258 = arith.cmpi eq, %256, %257 : vector<2x256xi32>
    %c262144_i32 = arith.constant 262144 : i32
    %259 = vector.broadcast %c262144_i32 : i32 to vector<2x256xi32>
    %260 = arith.andi %18, %259 : vector<2x256xi32>
    %c0_i32_54 = arith.constant 0 : i32
    %261 = vector.broadcast %c0_i32_54 : i32 to vector<2x256xi32>
    %262 = arith.cmpi ne, %260, %261 : vector<2x256xi32>
    %263 = arith.andi %258, %262 : vector<2x256xi1>
    %264 = arith.extui %263 : vector<2x256xi1> to vector<2x256xi32>
    %cst_55 = arith.constant dense<0> : vector<2xi32>
    %265 = vector.multi_reduction <add>, %264, %cst_55 [1] : vector<2x256xi32> to vector<2xi32>
    %266 = vector.shape_cast %265 : vector<2xi32> to vector<2x1xi32>
    %267 = arith.cmpi sge, %266, %254 : vector<2x1xi32>
    %c262144_i32_56 = arith.constant 262144 : i32
    %268 = vector.broadcast %c262144_i32_56 : i32 to vector<2x1xi32>
    %269 = arith.ori %252, %268 : vector<2x1xi32>
    %270 = arith.select %267, %269, %252 : vector<2x1xi1>, vector<2x1xi32>
    %271 = arith.subi %254, %266 : vector<2x1xi32>
    %272 = arith.select %267, %254, %271 : vector<2x1xi1>, vector<2x1xi32>
    %c-262144_i32 = arith.constant -262144 : i32
    %273 = vector.broadcast %c-262144_i32 : i32 to vector<2x256xi32>
    %274 = arith.andi %18, %273 : vector<2x256xi32>
    %275 = vector.broadcast %270 : vector<2x1xi32> to vector<2x256xi32>
    %276 = arith.cmpi eq, %274, %275 : vector<2x256xi32>
    %c131072_i32 = arith.constant 131072 : i32
    %277 = vector.broadcast %c131072_i32 : i32 to vector<2x256xi32>
    %278 = arith.andi %18, %277 : vector<2x256xi32>
    %c0_i32_57 = arith.constant 0 : i32
    %279 = vector.broadcast %c0_i32_57 : i32 to vector<2x256xi32>
    %280 = arith.cmpi ne, %278, %279 : vector<2x256xi32>
    %281 = arith.andi %276, %280 : vector<2x256xi1>
    %282 = arith.extui %281 : vector<2x256xi1> to vector<2x256xi32>
    %cst_58 = arith.constant dense<0> : vector<2xi32>
    %283 = vector.multi_reduction <add>, %282, %cst_58 [1] : vector<2x256xi32> to vector<2xi32>
    %284 = vector.shape_cast %283 : vector<2xi32> to vector<2x1xi32>
    %285 = arith.cmpi sge, %284, %272 : vector<2x1xi32>
    %c131072_i32_59 = arith.constant 131072 : i32
    %286 = vector.broadcast %c131072_i32_59 : i32 to vector<2x1xi32>
    %287 = arith.ori %270, %286 : vector<2x1xi32>
    %288 = arith.select %285, %287, %270 : vector<2x1xi1>, vector<2x1xi32>
    %289 = arith.subi %272, %284 : vector<2x1xi32>
    %290 = arith.select %285, %272, %289 : vector<2x1xi1>, vector<2x1xi32>
    %c-131072_i32 = arith.constant -131072 : i32
    %291 = vector.broadcast %c-131072_i32 : i32 to vector<2x256xi32>
    %292 = arith.andi %18, %291 : vector<2x256xi32>
    %293 = vector.broadcast %288 : vector<2x1xi32> to vector<2x256xi32>
    %294 = arith.cmpi eq, %292, %293 : vector<2x256xi32>
    %c65536_i32 = arith.constant 65536 : i32
    %295 = vector.broadcast %c65536_i32 : i32 to vector<2x256xi32>
    %296 = arith.andi %18, %295 : vector<2x256xi32>
    %c0_i32_60 = arith.constant 0 : i32
    %297 = vector.broadcast %c0_i32_60 : i32 to vector<2x256xi32>
    %298 = arith.cmpi ne, %296, %297 : vector<2x256xi32>
    %299 = arith.andi %294, %298 : vector<2x256xi1>
    %300 = arith.extui %299 : vector<2x256xi1> to vector<2x256xi32>
    %cst_61 = arith.constant dense<0> : vector<2xi32>
    %301 = vector.multi_reduction <add>, %300, %cst_61 [1] : vector<2x256xi32> to vector<2xi32>
    %302 = vector.shape_cast %301 : vector<2xi32> to vector<2x1xi32>
    %303 = arith.cmpi sge, %302, %290 : vector<2x1xi32>
    %c65536_i32_62 = arith.constant 65536 : i32
    %304 = vector.broadcast %c65536_i32_62 : i32 to vector<2x1xi32>
    %305 = arith.ori %288, %304 : vector<2x1xi32>
    %306 = arith.select %303, %305, %288 : vector<2x1xi1>, vector<2x1xi32>
    %307 = arith.subi %290, %302 : vector<2x1xi32>
    %308 = arith.select %303, %290, %307 : vector<2x1xi1>, vector<2x1xi32>
    %c-65536_i32 = arith.constant -65536 : i32
    %309 = vector.broadcast %c-65536_i32 : i32 to vector<2x256xi32>
    %310 = arith.andi %18, %309 : vector<2x256xi32>
    %311 = vector.broadcast %306 : vector<2x1xi32> to vector<2x256xi32>
    %312 = arith.cmpi eq, %310, %311 : vector<2x256xi32>
    %c32768_i32 = arith.constant 32768 : i32
    %313 = vector.broadcast %c32768_i32 : i32 to vector<2x256xi32>
    %314 = arith.andi %18, %313 : vector<2x256xi32>
    %c0_i32_63 = arith.constant 0 : i32
    %315 = vector.broadcast %c0_i32_63 : i32 to vector<2x256xi32>
    %316 = arith.cmpi ne, %314, %315 : vector<2x256xi32>
    %317 = arith.andi %312, %316 : vector<2x256xi1>
    %318 = arith.extui %317 : vector<2x256xi1> to vector<2x256xi32>
    %cst_64 = arith.constant dense<0> : vector<2xi32>
    %319 = vector.multi_reduction <add>, %318, %cst_64 [1] : vector<2x256xi32> to vector<2xi32>
    %320 = vector.shape_cast %319 : vector<2xi32> to vector<2x1xi32>
    %321 = arith.cmpi sge, %320, %308 : vector<2x1xi32>
    %c32768_i32_65 = arith.constant 32768 : i32
    %322 = vector.broadcast %c32768_i32_65 : i32 to vector<2x1xi32>
    %323 = arith.ori %306, %322 : vector<2x1xi32>
    %324 = arith.select %321, %323, %306 : vector<2x1xi1>, vector<2x1xi32>
    %325 = arith.subi %308, %320 : vector<2x1xi32>
    %326 = arith.select %321, %308, %325 : vector<2x1xi1>, vector<2x1xi32>
    %c-32768_i32 = arith.constant -32768 : i32
    %327 = vector.broadcast %c-32768_i32 : i32 to vector<2x256xi32>
    %328 = arith.andi %18, %327 : vector<2x256xi32>
    %329 = vector.broadcast %324 : vector<2x1xi32> to vector<2x256xi32>
    %330 = arith.cmpi eq, %328, %329 : vector<2x256xi32>
    %c16384_i32 = arith.constant 16384 : i32
    %331 = vector.broadcast %c16384_i32 : i32 to vector<2x256xi32>
    %332 = arith.andi %18, %331 : vector<2x256xi32>
    %c0_i32_66 = arith.constant 0 : i32
    %333 = vector.broadcast %c0_i32_66 : i32 to vector<2x256xi32>
    %334 = arith.cmpi ne, %332, %333 : vector<2x256xi32>
    %335 = arith.andi %330, %334 : vector<2x256xi1>
    %336 = arith.extui %335 : vector<2x256xi1> to vector<2x256xi32>
    %cst_67 = arith.constant dense<0> : vector<2xi32>
    %337 = vector.multi_reduction <add>, %336, %cst_67 [1] : vector<2x256xi32> to vector<2xi32>
    %338 = vector.shape_cast %337 : vector<2xi32> to vector<2x1xi32>
    %339 = arith.cmpi sge, %338, %326 : vector<2x1xi32>
    %c16384_i32_68 = arith.constant 16384 : i32
    %340 = vector.broadcast %c16384_i32_68 : i32 to vector<2x1xi32>
    %341 = arith.ori %324, %340 : vector<2x1xi32>
    %342 = arith.select %339, %341, %324 : vector<2x1xi1>, vector<2x1xi32>
    %343 = arith.subi %326, %338 : vector<2x1xi32>
    %344 = arith.select %339, %326, %343 : vector<2x1xi1>, vector<2x1xi32>
    %c-16384_i32 = arith.constant -16384 : i32
    %345 = vector.broadcast %c-16384_i32 : i32 to vector<2x256xi32>
    %346 = arith.andi %18, %345 : vector<2x256xi32>
    %347 = vector.broadcast %342 : vector<2x1xi32> to vector<2x256xi32>
    %348 = arith.cmpi eq, %346, %347 : vector<2x256xi32>
    %c8192_i32 = arith.constant 8192 : i32
    %349 = vector.broadcast %c8192_i32 : i32 to vector<2x256xi32>
    %350 = arith.andi %18, %349 : vector<2x256xi32>
    %c0_i32_69 = arith.constant 0 : i32
    %351 = vector.broadcast %c0_i32_69 : i32 to vector<2x256xi32>
    %352 = arith.cmpi ne, %350, %351 : vector<2x256xi32>
    %353 = arith.andi %348, %352 : vector<2x256xi1>
    %354 = arith.extui %353 : vector<2x256xi1> to vector<2x256xi32>
    %cst_70 = arith.constant dense<0> : vector<2xi32>
    %355 = vector.multi_reduction <add>, %354, %cst_70 [1] : vector<2x256xi32> to vector<2xi32>
    %356 = vector.shape_cast %355 : vector<2xi32> to vector<2x1xi32>
    %357 = arith.cmpi sge, %356, %344 : vector<2x1xi32>
    %c8192_i32_71 = arith.constant 8192 : i32
    %358 = vector.broadcast %c8192_i32_71 : i32 to vector<2x1xi32>
    %359 = arith.ori %342, %358 : vector<2x1xi32>
    %360 = arith.select %357, %359, %342 : vector<2x1xi1>, vector<2x1xi32>
    %361 = arith.subi %344, %356 : vector<2x1xi32>
    %362 = arith.select %357, %344, %361 : vector<2x1xi1>, vector<2x1xi32>
    %c-8192_i32 = arith.constant -8192 : i32
    %363 = vector.broadcast %c-8192_i32 : i32 to vector<2x256xi32>
    %364 = arith.andi %18, %363 : vector<2x256xi32>
    %365 = vector.broadcast %360 : vector<2x1xi32> to vector<2x256xi32>
    %366 = arith.cmpi eq, %364, %365 : vector<2x256xi32>
    %c4096_i32 = arith.constant 4096 : i32
    %367 = vector.broadcast %c4096_i32 : i32 to vector<2x256xi32>
    %368 = arith.andi %18, %367 : vector<2x256xi32>
    %c0_i32_72 = arith.constant 0 : i32
    %369 = vector.broadcast %c0_i32_72 : i32 to vector<2x256xi32>
    %370 = arith.cmpi ne, %368, %369 : vector<2x256xi32>
    %371 = arith.andi %366, %370 : vector<2x256xi1>
    %372 = arith.extui %371 : vector<2x256xi1> to vector<2x256xi32>
    %cst_73 = arith.constant dense<0> : vector<2xi32>
    %373 = vector.multi_reduction <add>, %372, %cst_73 [1] : vector<2x256xi32> to vector<2xi32>
    %374 = vector.shape_cast %373 : vector<2xi32> to vector<2x1xi32>
    %375 = arith.cmpi sge, %374, %362 : vector<2x1xi32>
    %c4096_i32_74 = arith.constant 4096 : i32
    %376 = vector.broadcast %c4096_i32_74 : i32 to vector<2x1xi32>
    %377 = arith.ori %360, %376 : vector<2x1xi32>
    %378 = arith.select %375, %377, %360 : vector<2x1xi1>, vector<2x1xi32>
    %379 = arith.subi %362, %374 : vector<2x1xi32>
    %380 = arith.select %375, %362, %379 : vector<2x1xi1>, vector<2x1xi32>
    %c-4096_i32 = arith.constant -4096 : i32
    %381 = vector.broadcast %c-4096_i32 : i32 to vector<2x256xi32>
    %382 = arith.andi %18, %381 : vector<2x256xi32>
    %383 = vector.broadcast %378 : vector<2x1xi32> to vector<2x256xi32>
    %384 = arith.cmpi eq, %382, %383 : vector<2x256xi32>
    %c2048_i32 = arith.constant 2048 : i32
    %385 = vector.broadcast %c2048_i32 : i32 to vector<2x256xi32>
    %386 = arith.andi %18, %385 : vector<2x256xi32>
    %c0_i32_75 = arith.constant 0 : i32
    %387 = vector.broadcast %c0_i32_75 : i32 to vector<2x256xi32>
    %388 = arith.cmpi ne, %386, %387 : vector<2x256xi32>
    %389 = arith.andi %384, %388 : vector<2x256xi1>
    %390 = arith.extui %389 : vector<2x256xi1> to vector<2x256xi32>
    %cst_76 = arith.constant dense<0> : vector<2xi32>
    %391 = vector.multi_reduction <add>, %390, %cst_76 [1] : vector<2x256xi32> to vector<2xi32>
    %392 = vector.shape_cast %391 : vector<2xi32> to vector<2x1xi32>
    %393 = arith.cmpi sge, %392, %380 : vector<2x1xi32>
    %c2048_i32_77 = arith.constant 2048 : i32
    %394 = vector.broadcast %c2048_i32_77 : i32 to vector<2x1xi32>
    %395 = arith.ori %378, %394 : vector<2x1xi32>
    %396 = arith.select %393, %395, %378 : vector<2x1xi1>, vector<2x1xi32>
    %397 = arith.subi %380, %392 : vector<2x1xi32>
    %398 = arith.select %393, %380, %397 : vector<2x1xi1>, vector<2x1xi32>
    %c-2048_i32 = arith.constant -2048 : i32
    %399 = vector.broadcast %c-2048_i32 : i32 to vector<2x256xi32>
    %400 = arith.andi %18, %399 : vector<2x256xi32>
    %401 = vector.broadcast %396 : vector<2x1xi32> to vector<2x256xi32>
    %402 = arith.cmpi eq, %400, %401 : vector<2x256xi32>
    %c1024_i32 = arith.constant 1024 : i32
    %403 = vector.broadcast %c1024_i32 : i32 to vector<2x256xi32>
    %404 = arith.andi %18, %403 : vector<2x256xi32>
    %c0_i32_78 = arith.constant 0 : i32
    %405 = vector.broadcast %c0_i32_78 : i32 to vector<2x256xi32>
    %406 = arith.cmpi ne, %404, %405 : vector<2x256xi32>
    %407 = arith.andi %402, %406 : vector<2x256xi1>
    %408 = arith.extui %407 : vector<2x256xi1> to vector<2x256xi32>
    %cst_79 = arith.constant dense<0> : vector<2xi32>
    %409 = vector.multi_reduction <add>, %408, %cst_79 [1] : vector<2x256xi32> to vector<2xi32>
    %410 = vector.shape_cast %409 : vector<2xi32> to vector<2x1xi32>
    %411 = arith.cmpi sge, %410, %398 : vector<2x1xi32>
    %c1024_i32_80 = arith.constant 1024 : i32
    %412 = vector.broadcast %c1024_i32_80 : i32 to vector<2x1xi32>
    %413 = arith.ori %396, %412 : vector<2x1xi32>
    %414 = arith.select %411, %413, %396 : vector<2x1xi1>, vector<2x1xi32>
    %415 = arith.subi %398, %410 : vector<2x1xi32>
    %416 = arith.select %411, %398, %415 : vector<2x1xi1>, vector<2x1xi32>
    %c-1024_i32 = arith.constant -1024 : i32
    %417 = vector.broadcast %c-1024_i32 : i32 to vector<2x256xi32>
    %418 = arith.andi %18, %417 : vector<2x256xi32>
    %419 = vector.broadcast %414 : vector<2x1xi32> to vector<2x256xi32>
    %420 = arith.cmpi eq, %418, %419 : vector<2x256xi32>
    %c512_i32 = arith.constant 512 : i32
    %421 = vector.broadcast %c512_i32 : i32 to vector<2x256xi32>
    %422 = arith.andi %18, %421 : vector<2x256xi32>
    %c0_i32_81 = arith.constant 0 : i32
    %423 = vector.broadcast %c0_i32_81 : i32 to vector<2x256xi32>
    %424 = arith.cmpi ne, %422, %423 : vector<2x256xi32>
    %425 = arith.andi %420, %424 : vector<2x256xi1>
    %426 = arith.extui %425 : vector<2x256xi1> to vector<2x256xi32>
    %cst_82 = arith.constant dense<0> : vector<2xi32>
    %427 = vector.multi_reduction <add>, %426, %cst_82 [1] : vector<2x256xi32> to vector<2xi32>
    %428 = vector.shape_cast %427 : vector<2xi32> to vector<2x1xi32>
    %429 = arith.cmpi sge, %428, %416 : vector<2x1xi32>
    %c512_i32_83 = arith.constant 512 : i32
    %430 = vector.broadcast %c512_i32_83 : i32 to vector<2x1xi32>
    %431 = arith.ori %414, %430 : vector<2x1xi32>
    %432 = arith.select %429, %431, %414 : vector<2x1xi1>, vector<2x1xi32>
    %433 = arith.subi %416, %428 : vector<2x1xi32>
    %434 = arith.select %429, %416, %433 : vector<2x1xi1>, vector<2x1xi32>
    %c-512_i32 = arith.constant -512 : i32
    %435 = vector.broadcast %c-512_i32 : i32 to vector<2x256xi32>
    %436 = arith.andi %18, %435 : vector<2x256xi32>
    %437 = vector.broadcast %432 : vector<2x1xi32> to vector<2x256xi32>
    %438 = arith.cmpi eq, %436, %437 : vector<2x256xi32>
    %c256_i32 = arith.constant 256 : i32
    %439 = vector.broadcast %c256_i32 : i32 to vector<2x256xi32>
    %440 = arith.andi %18, %439 : vector<2x256xi32>
    %c0_i32_84 = arith.constant 0 : i32
    %441 = vector.broadcast %c0_i32_84 : i32 to vector<2x256xi32>
    %442 = arith.cmpi ne, %440, %441 : vector<2x256xi32>
    %443 = arith.andi %438, %442 : vector<2x256xi1>
    %444 = arith.extui %443 : vector<2x256xi1> to vector<2x256xi32>
    %cst_85 = arith.constant dense<0> : vector<2xi32>
    %445 = vector.multi_reduction <add>, %444, %cst_85 [1] : vector<2x256xi32> to vector<2xi32>
    %446 = vector.shape_cast %445 : vector<2xi32> to vector<2x1xi32>
    %447 = arith.cmpi sge, %446, %434 : vector<2x1xi32>
    %c256_i32_86 = arith.constant 256 : i32
    %448 = vector.broadcast %c256_i32_86 : i32 to vector<2x1xi32>
    %449 = arith.ori %432, %448 : vector<2x1xi32>
    %450 = arith.select %447, %449, %432 : vector<2x1xi1>, vector<2x1xi32>
    %451 = arith.subi %434, %446 : vector<2x1xi32>
    %452 = arith.select %447, %434, %451 : vector<2x1xi1>, vector<2x1xi32>
    %c-256_i32 = arith.constant -256 : i32
    %453 = vector.broadcast %c-256_i32 : i32 to vector<2x256xi32>
    %454 = arith.andi %18, %453 : vector<2x256xi32>
    %455 = vector.broadcast %450 : vector<2x1xi32> to vector<2x256xi32>
    %456 = arith.cmpi eq, %454, %455 : vector<2x256xi32>
    %c128_i32 = arith.constant 128 : i32
    %457 = vector.broadcast %c128_i32 : i32 to vector<2x256xi32>
    %458 = arith.andi %18, %457 : vector<2x256xi32>
    %c0_i32_87 = arith.constant 0 : i32
    %459 = vector.broadcast %c0_i32_87 : i32 to vector<2x256xi32>
    %460 = arith.cmpi ne, %458, %459 : vector<2x256xi32>
    %461 = arith.andi %456, %460 : vector<2x256xi1>
    %462 = arith.extui %461 : vector<2x256xi1> to vector<2x256xi32>
    %cst_88 = arith.constant dense<0> : vector<2xi32>
    %463 = vector.multi_reduction <add>, %462, %cst_88 [1] : vector<2x256xi32> to vector<2xi32>
    %464 = vector.shape_cast %463 : vector<2xi32> to vector<2x1xi32>
    %465 = arith.cmpi sge, %464, %452 : vector<2x1xi32>
    %c128_i32_89 = arith.constant 128 : i32
    %466 = vector.broadcast %c128_i32_89 : i32 to vector<2x1xi32>
    %467 = arith.ori %450, %466 : vector<2x1xi32>
    %468 = arith.select %465, %467, %450 : vector<2x1xi1>, vector<2x1xi32>
    %469 = arith.subi %452, %464 : vector<2x1xi32>
    %470 = arith.select %465, %452, %469 : vector<2x1xi1>, vector<2x1xi32>
    %c-128_i32 = arith.constant -128 : i32
    %471 = vector.broadcast %c-128_i32 : i32 to vector<2x256xi32>
    %472 = arith.andi %18, %471 : vector<2x256xi32>
    %473 = vector.broadcast %468 : vector<2x1xi32> to vector<2x256xi32>
    %474 = arith.cmpi eq, %472, %473 : vector<2x256xi32>
    %c64_i32_90 = arith.constant 64 : i32
    %475 = vector.broadcast %c64_i32_90 : i32 to vector<2x256xi32>
    %476 = arith.andi %18, %475 : vector<2x256xi32>
    %c0_i32_91 = arith.constant 0 : i32
    %477 = vector.broadcast %c0_i32_91 : i32 to vector<2x256xi32>
    %478 = arith.cmpi ne, %476, %477 : vector<2x256xi32>
    %479 = arith.andi %474, %478 : vector<2x256xi1>
    %480 = arith.extui %479 : vector<2x256xi1> to vector<2x256xi32>
    %cst_92 = arith.constant dense<0> : vector<2xi32>
    %481 = vector.multi_reduction <add>, %480, %cst_92 [1] : vector<2x256xi32> to vector<2xi32>
    %482 = vector.shape_cast %481 : vector<2xi32> to vector<2x1xi32>
    %483 = arith.cmpi sge, %482, %470 : vector<2x1xi32>
    %c64_i32_93 = arith.constant 64 : i32
    %484 = vector.broadcast %c64_i32_93 : i32 to vector<2x1xi32>
    %485 = arith.ori %468, %484 : vector<2x1xi32>
    %486 = arith.select %483, %485, %468 : vector<2x1xi1>, vector<2x1xi32>
    %487 = arith.subi %470, %482 : vector<2x1xi32>
    %488 = arith.select %483, %470, %487 : vector<2x1xi1>, vector<2x1xi32>
    %c-64_i32 = arith.constant -64 : i32
    %489 = vector.broadcast %c-64_i32 : i32 to vector<2x256xi32>
    %490 = arith.andi %18, %489 : vector<2x256xi32>
    %491 = vector.broadcast %486 : vector<2x1xi32> to vector<2x256xi32>
    %492 = arith.cmpi eq, %490, %491 : vector<2x256xi32>
    %c32_i32 = arith.constant 32 : i32
    %493 = vector.broadcast %c32_i32 : i32 to vector<2x256xi32>
    %494 = arith.andi %18, %493 : vector<2x256xi32>
    %c0_i32_94 = arith.constant 0 : i32
    %495 = vector.broadcast %c0_i32_94 : i32 to vector<2x256xi32>
    %496 = arith.cmpi ne, %494, %495 : vector<2x256xi32>
    %497 = arith.andi %492, %496 : vector<2x256xi1>
    %498 = arith.extui %497 : vector<2x256xi1> to vector<2x256xi32>
    %cst_95 = arith.constant dense<0> : vector<2xi32>
    %499 = vector.multi_reduction <add>, %498, %cst_95 [1] : vector<2x256xi32> to vector<2xi32>
    %500 = vector.shape_cast %499 : vector<2xi32> to vector<2x1xi32>
    %501 = arith.cmpi sge, %500, %488 : vector<2x1xi32>
    %c32_i32_96 = arith.constant 32 : i32
    %502 = vector.broadcast %c32_i32_96 : i32 to vector<2x1xi32>
    %503 = arith.ori %486, %502 : vector<2x1xi32>
    %504 = arith.select %501, %503, %486 : vector<2x1xi1>, vector<2x1xi32>
    %505 = arith.subi %488, %500 : vector<2x1xi32>
    %506 = arith.select %501, %488, %505 : vector<2x1xi1>, vector<2x1xi32>
    %c-32_i32 = arith.constant -32 : i32
    %507 = vector.broadcast %c-32_i32 : i32 to vector<2x256xi32>
    %508 = arith.andi %18, %507 : vector<2x256xi32>
    %509 = vector.broadcast %504 : vector<2x1xi32> to vector<2x256xi32>
    %510 = arith.cmpi eq, %508, %509 : vector<2x256xi32>
    %c16_i32 = arith.constant 16 : i32
    %511 = vector.broadcast %c16_i32 : i32 to vector<2x256xi32>
    %512 = arith.andi %18, %511 : vector<2x256xi32>
    %c0_i32_97 = arith.constant 0 : i32
    %513 = vector.broadcast %c0_i32_97 : i32 to vector<2x256xi32>
    %514 = arith.cmpi ne, %512, %513 : vector<2x256xi32>
    %515 = arith.andi %510, %514 : vector<2x256xi1>
    %516 = arith.extui %515 : vector<2x256xi1> to vector<2x256xi32>
    %cst_98 = arith.constant dense<0> : vector<2xi32>
    %517 = vector.multi_reduction <add>, %516, %cst_98 [1] : vector<2x256xi32> to vector<2xi32>
    %518 = vector.shape_cast %517 : vector<2xi32> to vector<2x1xi32>
    %519 = arith.cmpi sge, %518, %506 : vector<2x1xi32>
    %c16_i32_99 = arith.constant 16 : i32
    %520 = vector.broadcast %c16_i32_99 : i32 to vector<2x1xi32>
    %521 = arith.ori %504, %520 : vector<2x1xi32>
    %522 = arith.select %519, %521, %504 : vector<2x1xi1>, vector<2x1xi32>
    %523 = arith.subi %506, %518 : vector<2x1xi32>
    %524 = arith.select %519, %506, %523 : vector<2x1xi1>, vector<2x1xi32>
    %c-16_i32 = arith.constant -16 : i32
    %525 = vector.broadcast %c-16_i32 : i32 to vector<2x256xi32>
    %526 = arith.andi %18, %525 : vector<2x256xi32>
    %527 = vector.broadcast %522 : vector<2x1xi32> to vector<2x256xi32>
    %528 = arith.cmpi eq, %526, %527 : vector<2x256xi32>
    %c8_i32 = arith.constant 8 : i32
    %529 = vector.broadcast %c8_i32 : i32 to vector<2x256xi32>
    %530 = arith.andi %18, %529 : vector<2x256xi32>
    %c0_i32_100 = arith.constant 0 : i32
    %531 = vector.broadcast %c0_i32_100 : i32 to vector<2x256xi32>
    %532 = arith.cmpi ne, %530, %531 : vector<2x256xi32>
    %533 = arith.andi %528, %532 : vector<2x256xi1>
    %534 = arith.extui %533 : vector<2x256xi1> to vector<2x256xi32>
    %cst_101 = arith.constant dense<0> : vector<2xi32>
    %535 = vector.multi_reduction <add>, %534, %cst_101 [1] : vector<2x256xi32> to vector<2xi32>
    %536 = vector.shape_cast %535 : vector<2xi32> to vector<2x1xi32>
    %537 = arith.cmpi sge, %536, %524 : vector<2x1xi32>
    %c8_i32_102 = arith.constant 8 : i32
    %538 = vector.broadcast %c8_i32_102 : i32 to vector<2x1xi32>
    %539 = arith.ori %522, %538 : vector<2x1xi32>
    %540 = arith.select %537, %539, %522 : vector<2x1xi1>, vector<2x1xi32>
    %541 = arith.subi %524, %536 : vector<2x1xi32>
    %542 = arith.select %537, %524, %541 : vector<2x1xi1>, vector<2x1xi32>
    %c-8_i32 = arith.constant -8 : i32
    %543 = vector.broadcast %c-8_i32 : i32 to vector<2x256xi32>
    %544 = arith.andi %18, %543 : vector<2x256xi32>
    %545 = vector.broadcast %540 : vector<2x1xi32> to vector<2x256xi32>
    %546 = arith.cmpi eq, %544, %545 : vector<2x256xi32>
    %c4_i32 = arith.constant 4 : i32
    %547 = vector.broadcast %c4_i32 : i32 to vector<2x256xi32>
    %548 = arith.andi %18, %547 : vector<2x256xi32>
    %c0_i32_103 = arith.constant 0 : i32
    %549 = vector.broadcast %c0_i32_103 : i32 to vector<2x256xi32>
    %550 = arith.cmpi ne, %548, %549 : vector<2x256xi32>
    %551 = arith.andi %546, %550 : vector<2x256xi1>
    %552 = arith.extui %551 : vector<2x256xi1> to vector<2x256xi32>
    %cst_104 = arith.constant dense<0> : vector<2xi32>
    %553 = vector.multi_reduction <add>, %552, %cst_104 [1] : vector<2x256xi32> to vector<2xi32>
    %554 = vector.shape_cast %553 : vector<2xi32> to vector<2x1xi32>
    %555 = arith.cmpi sge, %554, %542 : vector<2x1xi32>
    %c4_i32_105 = arith.constant 4 : i32
    %556 = vector.broadcast %c4_i32_105 : i32 to vector<2x1xi32>
    %557 = arith.ori %540, %556 : vector<2x1xi32>
    %558 = arith.select %555, %557, %540 : vector<2x1xi1>, vector<2x1xi32>
    %559 = arith.subi %542, %554 : vector<2x1xi32>
    %560 = arith.select %555, %542, %559 : vector<2x1xi1>, vector<2x1xi32>
    %c-4_i32 = arith.constant -4 : i32
    %561 = vector.broadcast %c-4_i32 : i32 to vector<2x256xi32>
    %562 = arith.andi %18, %561 : vector<2x256xi32>
    %563 = vector.broadcast %558 : vector<2x1xi32> to vector<2x256xi32>
    %564 = arith.cmpi eq, %562, %563 : vector<2x256xi32>
    %c2_i32 = arith.constant 2 : i32
    %565 = vector.broadcast %c2_i32 : i32 to vector<2x256xi32>
    %566 = arith.andi %18, %565 : vector<2x256xi32>
    %c0_i32_106 = arith.constant 0 : i32
    %567 = vector.broadcast %c0_i32_106 : i32 to vector<2x256xi32>
    %568 = arith.cmpi ne, %566, %567 : vector<2x256xi32>
    %569 = arith.andi %564, %568 : vector<2x256xi1>
    %570 = arith.extui %569 : vector<2x256xi1> to vector<2x256xi32>
    %cst_107 = arith.constant dense<0> : vector<2xi32>
    %571 = vector.multi_reduction <add>, %570, %cst_107 [1] : vector<2x256xi32> to vector<2xi32>
    %572 = vector.shape_cast %571 : vector<2xi32> to vector<2x1xi32>
    %573 = arith.cmpi sge, %572, %560 : vector<2x1xi32>
    %c2_i32_108 = arith.constant 2 : i32
    %574 = vector.broadcast %c2_i32_108 : i32 to vector<2x1xi32>
    %575 = arith.ori %558, %574 : vector<2x1xi32>
    %576 = arith.select %573, %575, %558 : vector<2x1xi1>, vector<2x1xi32>
    %577 = arith.subi %560, %572 : vector<2x1xi32>
    %578 = arith.select %573, %560, %577 : vector<2x1xi1>, vector<2x1xi32>
    %c-2_i32 = arith.constant -2 : i32
    %579 = vector.broadcast %c-2_i32 : i32 to vector<2x256xi32>
    %580 = arith.andi %18, %579 : vector<2x256xi32>
    %581 = vector.broadcast %576 : vector<2x1xi32> to vector<2x256xi32>
    %582 = arith.cmpi eq, %580, %581 : vector<2x256xi32>
    %c1_i32 = arith.constant 1 : i32
    %583 = vector.broadcast %c1_i32 : i32 to vector<2x256xi32>
    %584 = arith.andi %18, %583 : vector<2x256xi32>
    %c0_i32_109 = arith.constant 0 : i32
    %585 = vector.broadcast %c0_i32_109 : i32 to vector<2x256xi32>
    %586 = arith.cmpi ne, %584, %585 : vector<2x256xi32>
    %587 = arith.andi %582, %586 : vector<2x256xi1>
    %588 = arith.extui %587 : vector<2x256xi1> to vector<2x256xi32>
    %cst_110 = arith.constant dense<0> : vector<2xi32>
    %589 = vector.multi_reduction <add>, %588, %cst_110 [1] : vector<2x256xi32> to vector<2xi32>
    %590 = vector.shape_cast %589 : vector<2xi32> to vector<2x1xi32>
    %591 = arith.cmpi sge, %590, %578 : vector<2x1xi32>
    %c1_i32_111 = arith.constant 1 : i32
    %592 = vector.broadcast %c1_i32_111 : i32 to vector<2x1xi32>
    %593 = arith.ori %576, %592 : vector<2x1xi32>
    %594 = arith.select %591, %593, %576 : vector<2x1xi1>, vector<2x1xi32>
    %c0_i32_112 = arith.constant 0 : i32
    %595 = vector.broadcast %c0_i32_112 : i32 to vector<2x1xi32>
    %596 = arith.cmpi slt, %594, %595 : vector<2x1xi32>
    %c2147483647_i32 = arith.constant 2147483647 : i32
    %597 = vector.broadcast %c2147483647_i32 : i32 to vector<2x1xi32>
    %598 = arith.andi %594, %597 : vector<2x1xi32>
    %cst_113 = arith.constant dense<-1> : vector<2x1xi32>
    %599 = arith.xori %594, %cst_113 : vector<2x1xi32>
    %600 = arith.select %596, %598, %599 : vector<2x1xi1>, vector<2x1xi32>
    %601 = tpu.bitcast %600 : vector<2x1xi32> -> vector<2x1xf32>
    %602 = vector.broadcast %601 : vector<2x1xf32> to vector<2x256xf32>
    %603 = arith.cmpf oge, %11, %602 : vector<2x256xf32>
    %604 = arith.extui %603 : vector<2x256xi1> to vector<2x256xi8>
    %c0_114 = arith.constant 0 : index
    %c0_115 = arith.constant 0 : index
    %c0_116 = arith.constant 0 : index
    %605 = vector.load %arg6[%c0_114, %c0_115, %c0_116] : memref<1x2x256xi8, #tpu.memory_space<vmem>>, vector<1x2x256xi8>
    %606 = vector.shape_cast %605 : vector<1x2x256xi8> to vector<2x256xi8>
    %607 = vector.shape_cast %604 : vector<2x256xi8> to vector<1x2x256xi8>
    tpu.vector_store %arg6[%c0_114, %c0_115, %c0_116], %607 {strides = array<i32>} : memref<1x2x256xi8, #tpu.memory_space<vmem>>, vector<1x2x256xi8>,
    return
  }
  func.func @transform_0(%arg0: i32) -> (i32, i32) {
    %c0_i32 = arith.constant 0 : i32
    %c0_i32_0 = arith.constant 0 : i32
    %c0_i32_1 = arith.constant 0 : i32
    return %c0_i32, %c0_i32_0 : i32, i32
  }
  func.func @transform_1(%arg0: i32) -> (i32, i32) {
    %c0_i32 = arith.constant 0 : i32
    %c0_i32_0 = arith.constant 0 : i32
    %c0_i32_1 = arith.constant 0 : i32
    return %c0_i32, %c0_i32_0 : i32, i32
  }
  func.func @transform_2(%arg0: i32) -> (i32, i32) {
    %c0_i32 = arith.constant 0 : i32
    %c0_i32_0 = arith.constant 0 : i32
    %c0_i32_1 = arith.constant 0 : i32
    return %c0_i32, %c0_i32_0 : i32, i32
  }
  func.func @transform_3(%arg0: i32) -> (i32, i32) {
    %c0_i32 = arith.constant 0 : i32
    %c0_i32_0 = arith.constant 0 : i32
    return %c0_i32, %arg0 : i32, i32
  }
  func.func @transform_4(%arg0: i32) -> (i32, i32) {
    %c0_i32 = arith.constant 0 : i32
    %c0_i32_0 = arith.constant 0 : i32
    return %c0_i32, %arg0 : i32, i32
  }
  func.func @transform_5(%arg0: i32) -> (i32, i32, i32) {
    %c0_i32 = arith.constant 0 : i32
    %c0_i32_0 = arith.constant 0 : i32
    %c0_i32_1 = arith.constant 0 : i32
    return %arg0, %c0_i32, %c0_i32_0 : i32, i32, i32
  }
}

</mosaic_0001>

<llo_original>
// kernel: tpu_custom_call.1
$region0: #{tpu_custom_call.1}
  #allocation0 [shape = 'u32[]', space=smem, size = 0x4, offset = 0x4, fixed_abs, tag = 'smem constant byte address 0x4 - core index']
  #allocation1 [shape = 'u32[144,128]{1,0:T(1,128)}', space=vmem, size = 0x12000, scoped, tag = 'internal scratch']
  %s0 = inlined_call_operand.hbm [shape: bf16[2,32], index: 0, kind: input, shape index: {}]
  %s1 = inlined_call_operand.hbm [shape: bf16[32,128], index: 1, kind: input, shape index: {}]
  %s2 = inlined_call_operand.vmem [shape: f32[1,128], index: 2, kind: input, shape index: {}]
  %s3 = inlined_call_operand.hbm [shape: bf16[128,1024], index: 3, kind: input, shape index: {}]
  %s4 = inlined_call_operand.hbm [shape: f32[1,1024], index: 4, kind: input, shape index: {}]
  %s5 = inlined_call_operand.vmem [shape: s8[4,2,256], index: 5, kind: output, shape index: {}]
  %s6 = sld [smem:[#allocation0]]
  $region69: #{tpu_custom_call.1} parent=0
    _
  %s8 = ssub.s32 1, %s6
  %s9 = scalar_select 0, %s8, %s6
  $region1: #{tpu_custom_call.1} parent=0
    #allocation2 [shape = 'u8[512]{0}', space=vmem, size = 0x400, scoped, tag = 'input window, operand 0, single buffered']
    #allocation3 [shape = 's32[2]{0}', space=sflag, size = 0x8, scoped, tag = 'scoped memory for tpu_custom_call.1']
    #allocation4 [shape = 'u8[8192]{0}', space=vmem, size = 0x2000, scoped, tag = 'input window, operand 1, single buffered']
    #allocation5 [shape = 's32[1]{0}', space=sflag, size = 0x4, scoped, tag = 'scoped memory for tpu_custom_call.1']
    #allocation6 [shape = 'u8[131072]{0}', space=vmem, size = 0x20000, scoped, tag = 'input window, operand 3']
    #allocation7 [shape = 'u8[2048]{0}', space=vmem, size = 0x800, scoped, tag = 'input window, operand 4']
    %10 = vsyncpa [#allocation3], 0
    %11 = vsyncpa [#allocation5], 0
    loop: start=0, step=1, limit=6
    $region2: #{tpu_custom_call.1} parent=1 // loop_pre_header
      _
    $region3: #{tpu_custom_call.1} parent=1 // loop_header
      %s13 = sphi 0, %s17
      %p14 = scmp.ge.s32.totalorder %s13, 6
      %s21 = sphi 0, %s21
      %s23 = sphi 0, %s21
      %s24 = sphi 0, %s23
      %s38 = sphi 0, %s24
      %s42 = sphi 0, %s42
      %s44 = sphi 0, %s42
      %s45 = sphi 0, %s44
      %s59 = sphi 0, %s45
      %s63 = sphi 0, %s63
      %s65 = sphi 0, %s63
      %s66 = sphi 0, %s65
      %s80 = sphi 0, %s66
      %s86 = sphi 0, %s88
      %s89 = sphi 0, %s86
      %s90 = sphi 0, %s89
      %s106 = sphi 0, %s90
      %s112 = sphi 0, %s114
      %s115 = sphi 0, %s112
      %s116 = sphi 0, %s115
      %s132 = sphi 0, %s116
      %s138 = sphi 0, %s140
      %s141 = sphi 0, %s138
      %s142 = sphi 0, %s141
      %s158 = sphi 0, %s142
    $region4: #{tpu_custom_call.1} parent=1 // loop_header_branch
      %16 = sbr.rel (%p14) target = $region8
    $region5: #{tpu_custom_call.1} parent=1 // loop_body
      %s18 = ssub.s32 %s13, 1
      %s19 = ssub.s32 %s13, 2
      %s20 = sadd.s32 %s13, 1
      %s22 = sadd.s32 %s21, 1
      %p25 = scmp.eq.s32.totalorder %s13, 3
      %p26 = scmp.ne.s32.totalorder %s21, %s23
      %p27 = scmp.eq.s32.totalorder %s13, 0
      %p28 = por %p26, %p27
      %p29 = scmp.ne.s32.totalorder %s21, %s23
      %p30 = scmp.eq.s32.totalorder %s18, 3
      %p31 = por %p29, %p30
      %p32 = scmp.ne.s32.totalorder %s23, %s24
      %p33 = scmp.eq.s32.totalorder %s18, 0
      %p34 = por %p32, %p33
      %p35 = scmp.ne.s32.totalorder %s23, %s24
      %p36 = scmp.eq.s32.totalorder %s19, 3
      %p37 = por %p35, %p36
      %p39 = scmp.ne.s32.totalorder %s24, %s38
      %p40 = scmp.eq.s32.totalorder %s19, 0
      %p41 = por %p39, %p40
      %s43 = sadd.s32 %s42, 1
      %p46 = scmp.eq.s32.totalorder %s13, 3
      %p47 = scmp.ne.s32.totalorder %s42, %s44
      %p48 = scmp.eq.s32.totalorder %s13, 0
      %p49 = por %p47, %p48
      %p50 = scmp.ne.s32.totalorder %s42, %s44
      %p51 = scmp.eq.s32.totalorder %s18, 3
      %p52 = por %p50, %p51
      %p53 = scmp.ne.s32.totalorder %s44, %s45
      %p54 = scmp.eq.s32.totalorder %s18, 0
      %p55 = por %p53, %p54
      %p56 = scmp.ne.s32.totalorder %s44, %s45
      %p57 = scmp.eq.s32.totalorder %s19, 3
      %p58 = por %p56, %p57
      %p60 = scmp.ne.s32.totalorder %s45, %s59
      %p61 = scmp.eq.s32.totalorder %s19, 0
      %p62 = por %p60, %p61
      %s64 = sadd.s32 %s63, 1
      %p67 = scmp.eq.s32.totalorder %s13, 3
      %p68 = scmp.ne.s32.totalorder %s63, %s65
      %p69 = scmp.eq.s32.totalorder %s13, 0
      %p70 = por %p68, %p69
      %p71 = scmp.ne.s32.totalorder %s63, %s65
      %p72 = scmp.eq.s32.totalorder %s18, 3
      %p73 = por %p71, %p72
      %p74 = scmp.ne.s32.totalorder %s65, %s66
      %p75 = scmp.eq.s32.totalorder %s18, 0
      %p76 = por %p74, %p75
      %p77 = scmp.ne.s32.totalorder %s65, %s66
      %p78 = scmp.eq.s32.totalorder %s19, 3
      %p79 = por %p77, %p78
      %p81 = scmp.ne.s32.totalorder %s66, %s80
      %p82 = scmp.eq.s32.totalorder %s19, 0
      %p83 = por %p81, %p82
      %s84 = ssub.s32 %s13, %s20
      %p85 = scmp.eq.s32.totalorder %s84, 0
      %s87 = sadd.s32 %s86, 1
      %s88 = scalar_select %p85, %s86, %s87
      %p91 = pneg %p85
      %p92 = scmp.eq.s32.totalorder %s13, 3
      %p93 = por %p91, %p92
      %p94 = scmp.ne.s32.totalorder %s86, %s89
      %p95 = scmp.eq.s32.totalorder %s13, 0
      %p96 = por %p94, %p95
      %p97 = scmp.ne.s32.totalorder %s86, %s89
      %p98 = scmp.eq.s32.totalorder %s18, 3
      %p99 = por %p97, %p98
      %p100 = scmp.ne.s32.totalorder %s89, %s90
      %p101 = scmp.eq.s32.totalorder %s18, 0
      %p102 = por %p100, %p101
      %p103 = scmp.ne.s32.totalorder %s89, %s90
      %p104 = scmp.eq.s32.totalorder %s19, 3
      %p105 = por %p103, %p104
      %p107 = scmp.ne.s32.totalorder %s90, %s106
      %p108 = scmp.eq.s32.totalorder %s19, 0
      %p109 = por %p107, %p108
      %s110 = ssub.s32 %s13, %s20
      %p111 = scmp.eq.s32.totalorder %s110, 0
      %s113 = sadd.s32 %s112, 1
      %s114 = scalar_select %p111, %s112, %s113
      %p117 = pneg %p111
      %p118 = scmp.eq.s32.totalorder %s13, 3
      %p119 = por %p117, %p118
      %p120 = scmp.ne.s32.totalorder %s112, %s115
      %p121 = scmp.eq.s32.totalorder %s13, 0
      %p122 = por %p120, %p121
      %p123 = scmp.ne.s32.totalorder %s112, %s115
      %p124 = scmp.eq.s32.totalorder %s18, 3
      %p125 = por %p123, %p124
      %p126 = scmp.ne.s32.totalorder %s115, %s116
      %p127 = scmp.eq.s32.totalorder %s18, 0
      %p128 = por %p126, %p127
      %p129 = scmp.ne.s32.totalorder %s115, %s116
      %p130 = scmp.eq.s32.totalorder %s19, 3
      %p131 = por %p129, %p130
      %p133 = scmp.ne.s32.totalorder %s116, %s132
      %p134 = scmp.eq.s32.totalorder %s19, 0
      %p135 = por %p133, %p134
      %s136 = ssub.s32 %s13, %s20
      %p137 = scmp.eq.s32.totalorder %s136, 0
      %s139 = sadd.s32 %s138, 1
      %s140 = scalar_select %p137, %s138, %s139
      %p143 = pneg %p137
      %p144 = scmp.eq.s32.totalorder %s13, 3
      %p145 = por %p143, %p144
      %p146 = scmp.ne.s32.totalorder %s138, %s141
      %p147 = scmp.eq.s32.totalorder %s13, 0
      %p148 = por %p146, %p147
      %p149 = scmp.ne.s32.totalorder %s138, %s141
      %p150 = scmp.eq.s32.totalorder %s18, 3
      %p151 = por %p149, %p150
      %p152 = scmp.ne.s32.totalorder %s141, %s142
      %p153 = scmp.eq.s32.totalorder %s18, 0
      %p154 = por %p152, %p153
      %p155 = scmp.ne.s32.totalorder %s141, %s142
      %p156 = scmp.eq.s32.totalorder %s19, 3
      %p157 = por %p155, %p156
      %p159 = scmp.ne.s32.totalorder %s142, %s158
      %p160 = scmp.eq.s32.totalorder %s19, 0
      %p161 = por %p159, %p160
      %p162 = scmp.le.s32.totalorder 1, %s13
      %p163 = scmp.lt.s32.totalorder %s13, 5
      %p164 = pnand %p162, %p163
      %p165 = pneg %p164
      // Predicated region
      $region9: #{tpu_custom_call.1} parent=5 // pred_check
        _
      $region10: #{tpu_custom_call.1} parent=5 // pred_check_branch
        %167 = sbr.rel (%p164) target = $region12
      $region11: #{tpu_custom_call.1} parent=5 // pred_region
        %s168 = ssub.s32 %s13, 1
        // Predicated region
        $region13: #{tpu_custom_call.1} parent=11 // pred_check
          %p169 = pneg %p34
        $region14: #{tpu_custom_call.1} parent=11 // pred_check_branch
          %171 = sbr.rel (%p169) target = $region16
        $region15: #{tpu_custom_call.1} parent=11 // pred_region
          %s173 = ssub.s32 16, 16
          %174 = vsyncadd [#allocation3], %s173
          %s176 = sshll.u32 [#allocation2], 4
          %s177 = int_to_ptr.vmem [resolvable:$true] %s176
          %179 = dma.hbm_to_vmem [thread:$0]  %s0, 16, %s177, [#allocation3]
        $region16: #{tpu_custom_call.1} parent=11 // pred_fallthru
          _
        // Predicated region
        $region17: #{tpu_custom_call.1} parent=11 // pred_check
          %p180 = pneg %p55
        $region18: #{tpu_custom_call.1} parent=11 // pred_check_branch
          %182 = sbr.rel (%p180) target = $region20
        $region19: #{tpu_custom_call.1} parent=11 // pred_region
          %s184 = ssub.s32 256, 256
          %185 = vsyncadd [#allocation5], %s184
          %s186 = sshll.u32 [#allocation4], 4
          %s187 = int_to_ptr.vmem [resolvable:$true] %s186
          %192 = dma.hbm_to_vmem [thread:$0]  %s1, 256, %s187, [#allocation5], 64, 64, 4
        $region20: #{tpu_custom_call.1} parent=11 // pred_fallthru
          _
        // Predicated region
        $region21: #{tpu_custom_call.1} parent=11 // pred_check
          %p193 = pneg %p76
        $region22: #{tpu_custom_call.1} parent=11 // pred_check_branch
          %195 = sbr.rel (%p193) target = $region24
        $region23: #{tpu_custom_call.1} parent=11 // pred_region
          _
        $region24: #{tpu_custom_call.1} parent=11 // pred_fallthru
          _
      $region12: #{tpu_custom_call.1} parent=5 // pred_fallthru
        _
      %p196 = scmp.lt.s32.totalorder %s13, 4
      // Predicated region
      $region25: #{tpu_custom_call.1} parent=5 // pred_check
        %p197 = pneg %p196
      $region26: #{tpu_custom_call.1} parent=5 // pred_check_branch
        %199 = sbr.rel (%p197) target = $region28
      $region27: #{tpu_custom_call.1} parent=5 // pred_region
        // Predicated region
        $region29: #{tpu_custom_call.1} parent=27 // pred_check
          %p200 = pneg %p96
        $region30: #{tpu_custom_call.1} parent=27 // pred_check_branch
          %202 = sbr.rel (%p200) target = $region32
        $region31: #{tpu_custom_call.1} parent=27 // pred_region
          %s203 = sand.u32 %s13, 1
          %s204 = scalar_lea.sflag [#allocation3], %s203
          %s205 = sand.u32 %s86, 1
          %s206 = smul.addr %s205, 128
          %s207 = scalar_lea.vmem [#allocation6], %s206
          %s208 = smul.u32 2, %s13
          %s210 = ssub.s32 2048, 2048
          %211 = vsyncadd %s204, %s210
          %s212 = smul.addr %s208, 64
          %s213 = scalar_lea.hbm %s3, %s212
          %s214 = sshll.u32 %s207, 4
          %s215 = int_to_ptr.vmem [resolvable:$true] %s214
          %220 = dma.hbm_to_vmem [thread:$0]  %s213, 2048, %s215, %s204, 512, 128, 8
        $region32: #{tpu_custom_call.1} parent=27 // pred_fallthru
          _
        // Predicated region
        $region33: #{tpu_custom_call.1} parent=27 // pred_check
          %p221 = pneg %p122
        $region34: #{tpu_custom_call.1} parent=27 // pred_check_branch
          %223 = sbr.rel (%p221) target = $region36
        $region35: #{tpu_custom_call.1} parent=27 // pred_region
          %s224 = sand.u32 %s13, 1
          %s225 = scalar_lea.sflag [#allocation3], %s224
          %s226 = sand.u32 %s112, 1
          %s227 = smul.addr %s226, 2
          %s228 = scalar_lea.vmem [#allocation7], %s227
          %s229 = smul.u32 2, %s13
          %s231 = ssub.s32 32, 32
          %232 = vsyncadd %s225, %s231
          %s233 = smul.addr %s229, 16
          %s234 = scalar_lea.hbm %s4, %s233
          %s236 = sshll.u32 %s228, 4
          %s237 = int_to_ptr.vmem [resolvable:$true] %s236
          %239 = dma.hbm_to_vmem [thread:$0]  %s234, 32, %s237, %s225
        $region36: #{tpu_custom_call.1} parent=27 // pred_fallthru
          _
      $region28: #{tpu_custom_call.1} parent=5 // pred_fallthru
        _
      %p240 = scmp.le.s32.totalorder 1, %s13
      %p241 = scmp.lt.s32.totalorder %s13, 5
      %p242 = pnand %p240, %p241
      %p243 = pneg %p242
      // Predicated region
      $region37: #{tpu_custom_call.1} parent=5 // pred_check
        _
      $region38: #{tpu_custom_call.1} parent=5 // pred_check_branch
        %245 = sbr.rel (%p242) target = $region40
      $region39: #{tpu_custom_call.1} parent=5 // pred_region
        %s246 = ssub.s32 %s13, 1
        // Predicated region
        $region41: #{tpu_custom_call.1} parent=39 // pred_check
          %p247 = pneg %p34
        $region42: #{tpu_custom_call.1} parent=39 // pred_check_branch
          %249 = sbr.rel (%p247) target = $region44
        $region43: #{tpu_custom_call.1} parent=39 // pred_region
          %250 = dma.done [#allocation3], 16
        $region44: #{tpu_custom_call.1} parent=39 // pred_fallthru
          _
        // Predicated region
        $region45: #{tpu_custom_call.1} parent=39 // pred_check
          %p251 = pneg %p55
        $region46: #{tpu_custom_call.1} parent=39 // pred_check_branch
          %253 = sbr.rel (%p251) target = $region48
        $region47: #{tpu_custom_call.1} parent=39 // pred_region
          %254 = dma.done [#allocation5], 256
        $region48: #{tpu_custom_call.1} parent=39 // pred_fallthru
          _
        %s255 = sand.u32 %s18, 1
        %s256 = scalar_lea.sflag [#allocation3], %s255
        %s257 = sand.u32 %s89, 1
        %s258 = smul.addr %s257, 128
        %s259 = scalar_lea.vmem [#allocation6], %s258
        // Predicated region
        $region49: #{tpu_custom_call.1} parent=39 // pred_check
          %p260 = pneg %p102
        $region50: #{tpu_custom_call.1} parent=39 // pred_check_branch
          %262 = sbr.rel (%p260) target = $region52
        $region51: #{tpu_custom_call.1} parent=39 // pred_region
          %263 = dma.done %s256, 2048
        $region52: #{tpu_custom_call.1} parent=39 // pred_fallthru
          _
        %s264 = sand.u32 %s18, 1
        %s265 = scalar_lea.sflag [#allocation3], %s264
        %s266 = sand.u32 %s115, 1
        %s267 = smul.addr %s266, 2
        %s268 = scalar_lea.vmem [#allocation7], %s267
        // Predicated region
        $region53: #{tpu_custom_call.1} parent=39 // pred_check
          %p269 = pneg %p128
        $region54: #{tpu_custom_call.1} parent=39 // pred_check_branch
          %271 = sbr.rel (%p269) target = $region56
        $region55: #{tpu_custom_call.1} parent=39 // pred_region
          %272 = dma.done %s265, 32
        $region56: #{tpu_custom_call.1} parent=39 // pred_fallthru
          _
        %p273 = pneg %p34
        %p274 = pneg %p31
        %p275 = pneg %p55
        %p276 = pneg %p52
        %p277 = pneg %p76
        %p278 = pneg %p73
        %s279 = sand.u32 %s18, 1
        %s280 = scalar_lea.sflag [#allocation3], %s279
        %s281 = sand.u32 %s89, 1
        %s282 = smul.addr %s281, 128
        %s283 = scalar_lea.vmem [#allocation6], %s282
        %p284 = pneg %p102
        %p285 = pneg %p99
        %s286 = sand.u32 %s18, 1
        %s287 = scalar_lea.sflag [#allocation3], %s286
        %s288 = sand.u32 %s115, 1
        %s289 = smul.addr %s288, 2
        %s290 = scalar_lea.vmem [#allocation7], %s289
        %p291 = pneg %p128
        %p292 = pneg %p125
        %p293 = pneg %p154
        %p294 = pneg %p151
        %p295 = scmp.lt.s32.totalorder %s18, 3
        %s296 = scalar_select %p295, %s18, 3
        %s297 = smul.addr %s296, 2
        %s298 = scalar_lea.vmem %s5, %s297
        %s299 = smul.u32 2, %s18
        %s300 = smul.u32 2, %s18
        %p301 = scmp.lt.s32.totalorder %s18, 3
        %s302 = scalar_select %p301, %s18, 3
        %s303 = smul.addr %s302, 2
        %s304 = scalar_lea.vmem %s5, %s303
        %v308 = vld [vmem:[#allocation2] sm:$0x1]
        %v309 = vld [vmem:[#allocation4] sm:$0xf]
        %v310 = vld [vmem:[#allocation4 + $0x4] sm:$0xf]
        %v311 = vld [vmem:[#allocation4 + $0x8] sm:$0xf]
        %v312 = vld [vmem:[#allocation4 + $0xc] sm:$0xf]
        %v313 = vld [vmem:[%s2] sm:$0x1]
        %v315 = vlaneseq
        %v316 = vshrl.u32 %v315, 7
        %v317 = vsub.s32 0, %v316
        %v318 = vrot.slane %v313, %v317
        %v324 = vunpack.c.l.b16 %v309
        %v325 = vunpack.c.l.b16 %v310
        %v326 = vunpack.c.l.b16 %v311
        %v327 = vunpack.c.l.b16 %v312
        %v328 = vpack.c.b16 %v325, %v324
        %v329 = vpack.c.b16 %v327, %v326
        %vm332 = vcmask 261120
        %v334 = vsel %vm332, %v308, 0
        %336 = vmatprep.subr.bf16.mxu0 0
        %337 = vmatpush1.bf16.msra.mxu0 0
        %338 = vmatprep.subr.bf16.mxu0 0
        %339 = vmatpush1.bf16.msra.mxu0 0
        %340 = vmatprep.subr.bf16.mxu0 0
        %341 = vmatpush1.bf16.msra.mxu0 0
        %342 = vmatprep.subr.bf16.mxu0 0
        %343 = vmatpush1.bf16.msra.mxu0 0
        %344 = vmatprep.subr.bf16.mxu0 0
        %345 = vmatpush1.bf16.msra.mxu0 0
        %346 = vmatprep.subr.bf16.mxu0 0
        %347 = vmatpush1.bf16.msra.mxu0 0
        %348 = vmatprep.subr.bf16.mxu0 0
        %349 = vmatpush1.bf16.msra.mxu0 %v329
        %350 = vmatprep.subr.bf16.mxu0 0
        %351 = vmatpush1.bf16.msra.mxu0 %v328
        %352 = vmatprep.subr.bf16.mxu0 0
        %353 = vmatpush2.bf16.msra.mxu0 0
        %354 = vmatprep.subr.bf16.mxu0 0
        %355 = vmatpush2.bf16.msra.mxu0 0
        %356 = vmatprep.subr.bf16.mxu0 0
        %357 = vmatpush2.bf16.msra.mxu0 0
        %358 = vmatprep.subr.bf16.mxu0 0
        %359 = vmatpush2.bf16.msra.mxu0 0
        %360 = vmatprep.subr.bf16.mxu0 0
        %361 = vmatpush2.bf16.msra.mxu0 0
        %362 = vmatprep.subr.bf16.mxu0 0
        %363 = vmatpush2.bf16.msra.mxu0 0
        %364 = vmatprep.subr.bf16.mxu0 0
        %365 = vmatpush2.bf16.msra.mxu0 0
        %366 = vmatprep.subr.bf16.mxu0 0
        %367 = vmatpush2.bf16.msra.mxu0 0
        %368 = vmatprep.mubr.bf16.mxu0 0
        %369 = vmatmul.mubr.bf16.gmra.mxu0 %v334
        %v370 = vpop.f32.mrf.mxu0
        %v371 = vadd.f32 %v318, %v370
        %v372 = vpop.f32.mrf.mxu0
        %v373 = vpop.f32.mrf.mxu0
        %v374 = vpop.f32.mrf.mxu0
        %375 = vdwg.mxu0
        %v376 = vpack.c.bf16 %v371, %v371
        %v377 = vld [vmem:[%s259] sm:$0xff]
        %v378 = vld [vmem:[%s259 + $0x8] sm:$0xff]
        %v379 = vld [vmem:[%s259 + $0x10] sm:$0xff]
        %v380 = vld [vmem:[%s259 + $0x18] sm:$0xff]
        %v381 = vld [vmem:[%s259 + $0x20] sm:$0xff]
        %v382 = vld [vmem:[%s259 + $0x28] sm:$0xff]
        %v383 = vld [vmem:[%s259 + $0x30] sm:$0xff]
        %v384 = vld [vmem:[%s259 + $0x38] sm:$0xff]
        %v385 = vld [vmem:[%s259 + $0x40] sm:$0xff]
        %v386 = vld [vmem:[%s259 + $0x48] sm:$0xff]
        %v387 = vld [vmem:[%s259 + $0x50] sm:$0xff]
        %v388 = vld [vmem:[%s259 + $0x58] sm:$0xff]
        %v389 = vld [vmem:[%s259 + $0x60] sm:$0xff]
        %v390 = vld [vmem:[%s259 + $0x68] sm:$0xff]
        %v391 = vld [vmem:[%s259 + $0x70] sm:$0xff]
        %v392 = vld [vmem:[%s259 + $0x78] sm:$0xff]
        %v393 = vld [vmem:[%s268] sm:$0x3]
        %v395 = vlaneseq
        %v396 = vshrl.u32 %v395, 7
        %v397 = vsub.s32 0, %v396
        %v398 = vrot.slane %v393, %v397
        %v399 = vlaneseq
        %v400 = vshrl.u32 %v399, 7
        %v401 = vsub.s32 1, %v400
        %v402 = vrot.slane %v393, %v401
        %v421 = vunpack.c.l.b16 %v377
        %v422 = vunpack.c.h.b16 %v377
        %v423 = vunpack.c.l.b16 %v378
        %v424 = vunpack.c.h.b16 %v378
        %v425 = vunpack.c.l.b16 %v379
        %v426 = vunpack.c.h.b16 %v379
        %v427 = vunpack.c.l.b16 %v380
        %v428 = vunpack.c.h.b16 %v380
        %v429 = vunpack.c.l.b16 %v381
        %v430 = vunpack.c.h.b16 %v381
        %v431 = vunpack.c.l.b16 %v382
        %v432 = vunpack.c.h.b16 %v382
        %v433 = vunpack.c.l.b16 %v383
        %v434 = vunpack.c.h.b16 %v383
        %v435 = vunpack.c.l.b16 %v384
        %v436 = vunpack.c.h.b16 %v384
        %v437 = vunpack.c.l.b16 %v385
        %v438 = vunpack.c.h.b16 %v385
        %v439 = vunpack.c.l.b16 %v386
        %v440 = vunpack.c.h.b16 %v386
        %v441 = vunpack.c.l.b16 %v387
        %v442 = vunpack.c.h.b16 %v387
        %v443 = vunpack.c.l.b16 %v388
        %v444 = vunpack.c.h.b16 %v388
        %v445 = vunpack.c.l.b16 %v389
        %v446 = vunpack.c.h.b16 %v389
        %v447 = vunpack.c.l.b16 %v390
        %v448 = vunpack.c.h.b16 %v390
        %v449 = vunpack.c.l.b16 %v391
        %v450 = vunpack.c.h.b16 %v391
        %v451 = vunpack.c.l.b16 %v392
        %v452 = vunpack.c.h.b16 %v392
        %v453 = vpack.c.b16 %v423, %v421
        %v454 = vpack.c.b16 %v424, %v422
        %v455 = vpack.c.b16 %v427, %v425
        %v456 = vpack.c.b16 %v428, %v426
        %v457 = vpack.c.b16 %v431, %v429
        %v458 = vpack.c.b16 %v432, %v430
        %v459 = vpack.c.b16 %v435, %v433
        %v460 = vpack.c.b16 %v436, %v434
        %v461 = vpack.c.b16 %v439, %v437
        %v462 = vpack.c.b16 %v440, %v438
        %v463 = vpack.c.b16 %v443, %v441
        %v464 = vpack.c.b16 %v444, %v442
        %v465 = vpack.c.b16 %v447, %v445
        %v466 = vpack.c.b16 %v448, %v446
        %v467 = vpack.c.b16 %v451, %v449
        %v468 = vpack.c.b16 %v452, %v450
        %485 = vmatprep.subr.bf16.mxu0 %v468
        %486 = vmatpush1.bf16.msra.mxu0 %v467
        %487 = vmatprep.subr.bf16.mxu0 %v466
        %488 = vmatpush1.bf16.msra.mxu0 %v465
        %489 = vmatprep.subr.bf16.mxu0 %v464
        %490 = vmatpush1.bf16.msra.mxu0 %v463
        %491 = vmatprep.subr.bf16.mxu0 %v462
        %492 = vmatpush1.bf16.msra.mxu0 %v461
        %493 = vmatprep.subr.bf16.mxu0 %v460
        %494 = vmatpush1.bf16.msra.mxu0 %v459
        %495 = vmatprep.subr.bf16.mxu0 %v458
        %496 = vmatpush1.bf16.msra.mxu0 %v457
        %497 = vmatprep.subr.bf16.mxu0 %v456
        %498 = vmatpush1.bf16.msra.mxu0 %v455
        %499 = vmatprep.subr.bf16.mxu0 %v454
        %500 = vmatpush1.bf16.msra.mxu0 %v453
        %501 = vmatprep.subr.bf16.mxu0 0
        %502 = vmatpush2.bf16.msra.mxu0 0
        %503 = vmatprep.subr.bf16.mxu0 0
        %504 = vmatpush2.bf16.msra.mxu0 0
        %505 = vmatprep.subr.bf16.mxu0 0
        %506 = vmatpush2.bf16.msra.mxu0 0
        %507 = vmatprep.subr.bf16.mxu0 0
        %508 = vmatpush2.bf16.msra.mxu0 0
        %509 = vmatprep.subr.bf16.mxu0 0
        %510 = vmatpush2.bf16.msra.mxu0 0
        %511 = vmatprep.subr.bf16.mxu0 0
        %512 = vmatpush2.bf16.msra.mxu0 0
        %513 = vmatprep.subr.bf16.mxu0 0
        %514 = vmatpush2.bf16.msra.mxu0 0
        %515 = vmatprep.subr.bf16.mxu0 0
        %516 = vmatpush2.bf16.msra.mxu0 0
        %517 = vmatprep.mubr.bf16.mxu0 0
        %518 = vmatmul.mubr.bf16.gmra.mxu0 %v376
        %v519 = vpop.f32.mrf.mxu0
        %v520 = vadd.f32 %v398, %v519
        %v521 = vpop.f32.mrf.mxu0
        %v522 = vadd.f32 %v402, %v521
        %v523 = vpop.f32.mrf.mxu0
        %v524 = vpop.f32.mrf.mxu0
        %525 = vdwg.mxu0
        %vm528 = vcmp.lt.s32.totalorder %v520, 0
        %vm529 = vcmp.lt.s32.totalorder %v522, 0
        %v530 = vxor.u32 %v520, 4294967295
        %v531 = vxor.u32 %v522, 4294967295
        %v532 = vor.u32 %v520, 2147483648
        %v533 = vor.u32 %v522, 2147483648
        %v534 = vsel %vm528, %v530, %v532
        %v535 = vsel %vm529, %v531, %v533
        %v536 = vand.u32 %v534, 2147483648
        %v537 = vand.u32 %v535, 2147483648
        %vm538 = vcmp.ne.s32.totalorder %v536, 0
        %vm539 = vcmp.ne.s32.totalorder %v537, 0
        %v540 = vsel %vm538, 1, 0
        %v541 = vsel %vm539, 1, 0
        %vm542 = vcmask 1041408
        %v543 = vsel %vm542, %v540, 0
        %v544 = vsel %vm542, %v541, 0
        %v545 = vadd.s32 %v543, %v544
        %v546 = vand.u32 %v545, 65535
        %v547 = vshrl.u32 %v545, 16
        %v548 = vcvt.s32.f32 %v546
        %v549 = vcvt.s32.f32 %v547
        %550 = vadd.xlane.f32.xlu0 %v548
        %v551 = vpop.xlane.xlu0 %550
        %552 = vadd.xlane.f32.xlu0 %v549
        %v553 = vpop.xlane.xlu0 %552
        %v554 = vcvt.f32.s32 %v551
        %v555 = vcvt.f32.s32 %v553
        %v556 = vshll.u32 %v555, 16
        %v557 = vadd.s32 %v556, %v554
        %vm558 = vcmp.ge.s32.totalorder %v557, 64
        %v559 = vsel %vm558, 2147483648, 0
        %v560 = vsub.s32 64, %v557
        %v561 = vsel %vm558, 64, %v560
        %vm562 = vcmp.eq.s32.totalorder %v536, %v559
        %vm563 = vcmp.eq.s32.totalorder %v537, %v559
        %v564 = vand.u32 %v534, 1073741824
        %v565 = vand.u32 %v535, 1073741824
        %vm566 = vcmp.ne.s32.totalorder %v564, 0
        %vm567 = vcmp.ne.s32.totalorder %v565, 0
        %vm568 = vmand %vm562, %vm566
        %vm569 = vmand %vm563, %vm567
        %v570 = vsel %vm568, 1, 0
        %v571 = vsel %vm569, 1, 0
        %v572 = vsel %vm542, %v570, 0
        %v573 = vsel %vm542, %v571, 0
        %v574 = vadd.s32 %v572, %v573
        %v575 = vand.u32 %v574, 65535
        %v576 = vshrl.u32 %v574, 16
        %v577 = vcvt.s32.f32 %v575
        %v578 = vcvt.s32.f32 %v576
        %579 = vadd.xlane.f32.xlu0 %v577
        %v580 = vpop.xlane.xlu0 %579
        %581 = vadd.xlane.f32.xlu0 %v578
        %v582 = vpop.xlane.xlu0 %581
        %v583 = vcvt.f32.s32 %v580
        %v584 = vcvt.f32.s32 %v582
        %v585 = vshll.u32 %v584, 16
        %v586 = vadd.s32 %v585, %v583
        %vm587 = vcmp.ge.s32.totalorder %v586, %v561
        %v588 = vor.u32 %v559, 1073741824
        %v589 = vsel %vm587, %v588, %v559
        %v590 = vsub.s32 %v561, %v586
        %v591 = vsel %vm587, %v561, %v590
        %v592 = vand.u32 %v534, 3221225472
        %v593 = vand.u32 %v535, 3221225472
        %vm594 = vcmp.eq.s32.totalorder %v592, %v589
        %vm595 = vcmp.eq.s32.totalorder %v593, %v589
        %v596 = vand.u32 %v534, 536870912
        %v597 = vand.u32 %v535, 536870912
        %vm598 = vcmp.ne.s32.totalorder %v596, 0
        %vm599 = vcmp.ne.s32.totalorder %v597, 0
        %vm600 = vmand %vm594, %vm598
        %vm601 = vmand %vm595, %vm599
        %v602 = vsel %vm600, 1, 0
        %v603 = vsel %vm601, 1, 0
        %v604 = vsel %vm542, %v602, 0
        %v605 = vsel %vm542, %v603, 0
        %v606 = vadd.s32 %v604, %v605
        %v607 = vand.u32 %v606, 65535
        %v608 = vshrl.u32 %v606, 16
        %v609 = vcvt.s32.f32 %v607
        %v610 = vcvt.s32.f32 %v608
        %611 = vadd.xlane.f32.xlu0 %v609
        %v612 = vpop.xlane.xlu0 %611
        %613 = vadd.xlane.f32.xlu0 %v610
        %v614 = vpop.xlane.xlu0 %613
        %v615 = vcvt.f32.s32 %v612
        %v616 = vcvt.f32.s32 %v614
        %v617 = vshll.u32 %v616, 16
        %v618 = vadd.s32 %v617, %v615
        %vm619 = vcmp.ge.s32.totalorder %v618, %v591
        %v620 = vor.u32 %v589, 536870912
        %v621 = vsel %vm619, %v620, %v589
        %v622 = vsub.s32 %v591, %v618
        %v623 = vsel %vm619, %v591, %v622
        %v624 = vand.u32 %v534, 3758096384
        %v625 = vand.u32 %v535, 3758096384
        %vm626 = vcmp.eq.s32.totalorder %v624, %v621
        %vm627 = vcmp.eq.s32.totalorder %v625, %v621
        %v628 = vand.u32 %v534, 268435456
        %v629 = vand.u32 %v535, 268435456
        %vm630 = vcmp.ne.s32.totalorder %v628, 0
        %vm631 = vcmp.ne.s32.totalorder %v629, 0
        %vm632 = vmand %vm626, %vm630
        %vm633 = vmand %vm627, %vm631
        %v634 = vsel %vm632, 1, 0
        %v635 = vsel %vm633, 1, 0
        %v636 = vsel %vm542, %v634, 0
        %v637 = vsel %vm542, %v635, 0
        %v638 = vadd.s32 %v636, %v637
        %v639 = vand.u32 %v638, 65535
        %v640 = vshrl.u32 %v638, 16
        %v641 = vcvt.s32.f32 %v639
        %v642 = vcvt.s32.f32 %v640
        %643 = vadd.xlane.f32.xlu0 %v641
        %v644 = vpop.xlane.xlu0 %643
        %645 = vadd.xlane.f32.xlu0 %v642
        %v646 = vpop.xlane.xlu0 %645
        %v647 = vcvt.f32.s32 %v644
        %v648 = vcvt.f32.s32 %v646
        %v649 = vshll.u32 %v648, 16
        %v650 = vadd.s32 %v649, %v647
        %vm651 = vcmp.ge.s32.totalorder %v650, %v623
        %v652 = vor.u32 %v621, 268435456
        %v653 = vsel %vm651, %v652, %v621
        %v654 = vsub.s32 %v623, %v650
        %v655 = vsel %vm651, %v623, %v654
        %v656 = vand.u32 %v534, 4026531840
        %v657 = vand.u32 %v535, 4026531840
        %vm658 = vcmp.eq.s32.totalorder %v656, %v653
        %vm659 = vcmp.eq.s32.totalorder %v657, %v653
        %v660 = vand.u32 %v534, 134217728
        %v661 = vand.u32 %v535, 134217728
        %vm662 = vcmp.ne.s32.totalorder %v660, 0
        %vm663 = vcmp.ne.s32.totalorder %v661, 0
        %vm664 = vmand %vm658, %vm662
        %vm665 = vmand %vm659, %vm663
        %v666 = vsel %vm664, 1, 0
        %v667 = vsel %vm665, 1, 0
        %v668 = vsel %vm542, %v666, 0
        %v669 = vsel %vm542, %v667, 0
        %v670 = vadd.s32 %v668, %v669
        %v671 = vand.u32 %v670, 65535
        %v672 = vshrl.u32 %v670, 16
        %v673 = vcvt.s32.f32 %v671
        %v674 = vcvt.s32.f32 %v672
        %675 = vadd.xlane.f32.xlu0 %v673
        %v676 = vpop.xlane.xlu0 %675
        %677 = vadd.xlane.f32.xlu0 %v674
        %v678 = vpop.xlane.xlu0 %677
        %v679 = vcvt.f32.s32 %v676
        %v680 = vcvt.f32.s32 %v678
        %v681 = vshll.u32 %v680, 16
        %v682 = vadd.s32 %v681, %v679
        %vm683 = vcmp.ge.s32.totalorder %v682, %v655
        %v684 = vor.u32 %v653, 134217728
        %v685 = vsel %vm683, %v684, %v653
        %v686 = vsub.s32 %v655, %v682
        %v687 = vsel %vm683, %v655, %v686
        %v688 = vand.u32 %v534, 4160749568
        %v689 = vand.u32 %v535, 4160749568
        %vm690 = vcmp.eq.s32.totalorder %v688, %v685
        %vm691 = vcmp.eq.s32.totalorder %v689, %v685
        %v692 = vand.u32 %v534, 67108864
        %v693 = vand.u32 %v535, 67108864
        %vm694 = vcmp.ne.s32.totalorder %v692, 0
        %vm695 = vcmp.ne.s32.totalorder %v693, 0
        %vm696 = vmand %vm690, %vm694
        %vm697 = vmand %vm691, %vm695
        %v698 = vsel %vm696, 1, 0
        %v699 = vsel %vm697, 1, 0
        %v700 = vsel %vm542, %v698, 0
        %v701 = vsel %vm542, %v699, 0
        %v702 = vadd.s32 %v700, %v701
        %v703 = vand.u32 %v702, 65535
        %v704 = vshrl.u32 %v702, 16
        %v705 = vcvt.s32.f32 %v703
        %v706 = vcvt.s32.f32 %v704
        %707 = vadd.xlane.f32.xlu0 %v705
        %v708 = vpop.xlane.xlu0 %707
        %709 = vadd.xlane.f32.xlu0 %v706
        %v710 = vpop.xlane.xlu0 %709
        %v711 = vcvt.f32.s32 %v708
        %v712 = vcvt.f32.s32 %v710
        %v713 = vshll.u32 %v712, 16
        %v714 = vadd.s32 %v713, %v711
        %vm715 = vcmp.ge.s32.totalorder %v714, %v687
        %v716 = vor.u32 %v685, 67108864
        %v717 = vsel %vm715, %v716, %v685
        %v718 = vsub.s32 %v687, %v714
        %v719 = vsel %vm715, %v687, %v718
        %v720 = vand.u32 %v534, 4227858432
        %v721 = vand.u32 %v535, 4227858432
        %vm722 = vcmp.eq.s32.totalorder %v720, %v717
        %vm723 = vcmp.eq.s32.totalorder %v721, %v717
        %v724 = vand.u32 %v534, 33554432
        %v725 = vand.u32 %v535, 33554432
        %vm726 = vcmp.ne.s32.totalorder %v724, 0
        %vm727 = vcmp.ne.s32.totalorder %v725, 0
        %vm728 = vmand %vm722, %vm726
        %vm729 = vmand %vm723, %vm727
        %v730 = vsel %vm728, 1, 0
        %v731 = vsel %vm729, 1, 0
        %v732 = vsel %vm542, %v730, 0
        %v733 = vsel %vm542, %v731, 0
        %v734 = vadd.s32 %v732, %v733
        %v735 = vand.u32 %v734, 65535
        %v736 = vshrl.u32 %v734, 16
        %v737 = vcvt.s32.f32 %v735
        %v738 = vcvt.s32.f32 %v736
        %739 = vadd.xlane.f32.xlu0 %v737
        %v740 = vpop.xlane.xlu0 %739
        %741 = vadd.xlane.f32.xlu0 %v738
        %v742 = vpop.xlane.xlu0 %741
        %v743 = vcvt.f32.s32 %v740
        %v744 = vcvt.f32.s32 %v742
        %v745 = vshll.u32 %v744, 16
        %v746 = vadd.s32 %v745, %v743
        %vm747 = vcmp.ge.s32.totalorder %v746, %v719
        %v748 = vor.u32 %v717, 33554432
        %v749 = vsel %vm747, %v748, %v717
        %v750 = vsub.s32 %v719, %v746
        %v751 = vsel %vm747, %v719, %v750
        %v752 = vand.u32 %v534, 4261412864
        %v753 = vand.u32 %v535, 4261412864
        %vm754 = vcmp.eq.s32.totalorder %v752, %v749
        %vm755 = vcmp.eq.s32.totalorder %v753, %v749
        %v756 = vand.u32 %v534, 16777216
        %v757 = vand.u32 %v535, 16777216
        %vm758 = vcmp.ne.s32.totalorder %v756, 0
        %vm759 = vcmp.ne.s32.totalorder %v757, 0
        %vm760 = vmand %vm754, %vm758
        %vm761 = vmand %vm755, %vm759
        %v762 = vsel %vm760, 1, 0
        %v763 = vsel %vm761, 1, 0
        %v764 = vsel %vm542, %v762, 0
        %v765 = vsel %vm542, %v763, 0
        %v766 = vadd.s32 %v764, %v765
        %v767 = vand.u32 %v766, 65535
        %v768 = vshrl.u32 %v766, 16
        %v769 = vcvt.s32.f32 %v767
        %v770 = vcvt.s32.f32 %v768
        %771 = vadd.xlane.f32.xlu0 %v769
        %v772 = vpop.xlane.xlu0 %771
        %773 = vadd.xlane.f32.xlu0 %v770
        %v774 = vpop.xlane.xlu0 %773
        %v775 = vcvt.f32.s32 %v772
        %v776 = vcvt.f32.s32 %v774
        %v777 = vshll.u32 %v776, 16
        %v778 = vadd.s32 %v777, %v775
        %vm779 = vcmp.ge.s32.totalorder %v778, %v751
        %v780 = vor.u32 %v749, 16777216
        %v781 = vsel %vm779, %v780, %v749
        %v782 = vsub.s32 %v751, %v778
        %v783 = vsel %vm779, %v751, %v782
        %v784 = vand.u32 %v534, 4278190080
        %v785 = vand.u32 %v535, 4278190080
        %vm786 = vcmp.eq.s32.totalorder %v784, %v781
        %vm787 = vcmp.eq.s32.totalorder %v785, %v781
        %v788 = vand.u32 %v534, 8388608
        %v789 = vand.u32 %v535, 8388608
        %vm790 = vcmp.ne.s32.totalorder %v788, 0
        %vm791 = vcmp.ne.s32.totalorder %v789, 0
        %vm792 = vmand %vm786, %vm790
        %vm793 = vmand %vm787, %vm791
        %v794 = vsel %vm792, 1, 0
        %v795 = vsel %vm793, 1, 0
        %v796 = vsel %vm542, %v794, 0
        %v797 = vsel %vm542, %v795, 0
        %v798 = vadd.s32 %v796, %v797
        %v799 = vand.u32 %v798, 65535
        %v800 = vshrl.u32 %v798, 16
        %v801 = vcvt.s32.f32 %v799
        %v802 = vcvt.s32.f32 %v800
        %803 = vadd.xlane.f32.xlu0 %v801
        %v804 = vpop.xlane.xlu0 %803
        %805 = vadd.xlane.f32.xlu0 %v802
        %v806 = vpop.xlane.xlu0 %805
        %v807 = vcvt.f32.s32 %v804
        %v808 = vcvt.f32.s32 %v806
        %v809 = vshll.u32 %v808, 16
        %v810 = vadd.s32 %v809, %v807
        %vm811 = vcmp.ge.s32.totalorder %v810, %v783
        %v812 = vor.u32 %v781, 8388608
        %v813 = vsel %vm811, %v812, %v781
        %v814 = vsub.s32 %v783, %v810
        %v815 = vsel %vm811, %v783, %v814
        %v816 = vand.u32 %v534, 4286578688
        %v817 = vand.u32 %v535, 4286578688
        %vm818 = vcmp.eq.s32.totalorder %v816, %v813
        %vm819 = vcmp.eq.s32.totalorder %v817, %v813
        %v820 = vand.u32 %v534, 4194304
        %v821 = vand.u32 %v535, 4194304
        %vm822 = vcmp.ne.s32.totalorder %v820, 0
        %vm823 = vcmp.ne.s32.totalorder %v821, 0
        %vm824 = vmand %vm818, %vm822
        %vm825 = vmand %vm819, %vm823
        %v826 = vsel %vm824, 1, 0
        %v827 = vsel %vm825, 1, 0
        %v828 = vsel %vm542, %v826, 0
        %v829 = vsel %vm542, %v827, 0
        %v830 = vadd.s32 %v828, %v829
        %v831 = vand.u32 %v830, 65535
        %v832 = vshrl.u32 %v830, 16
        %v833 = vcvt.s32.f32 %v831
        %v834 = vcvt.s32.f32 %v832
        %835 = vadd.xlane.f32.xlu0 %v833
        %v836 = vpop.xlane.xlu0 %835
        %837 = vadd.xlane.f32.xlu0 %v834
        %v838 = vpop.xlane.xlu0 %837
        %v839 = vcvt.f32.s32 %v836
        %v840 = vcvt.f32.s32 %v838
        %v841 = vshll.u32 %v840, 16
        %v842 = vadd.s32 %v841, %v839
        %vm843 = vcmp.ge.s32.totalorder %v842, %v815
        %v844 = vor.u32 %v813, 4194304
        %v845 = vsel %vm843, %v844, %v813
        %v846 = vsub.s32 %v815, %v842
        %v847 = vsel %vm843, %v815, %v846
        %v848 = vand.u32 %v534, 4290772992
        %v849 = vand.u32 %v535, 4290772992
        %vm850 = vcmp.eq.s32.totalorder %v848, %v845
        %vm851 = vcmp.eq.s32.totalorder %v849, %v845
        %v852 = vand.u32 %v534, 2097152
        %v853 = vand.u32 %v535, 2097152
        %vm854 = vcmp.ne.s32.totalorder %v852, 0
        %vm855 = vcmp.ne.s32.totalorder %v853, 0
        %vm856 = vmand %vm850, %vm854
        %vm857 = vmand %vm851, %vm855
        %v858 = vsel %vm856, 1, 0
        %v859 = vsel %vm857, 1, 0
        %v860 = vsel %vm542, %v858, 0
        %v861 = vsel %vm542, %v859, 0
        %v862 = vadd.s32 %v860, %v861
        %v863 = vand.u32 %v862, 65535
        %v864 = vshrl.u32 %v862, 16
        %v865 = vcvt.s32.f32 %v863
        %v866 = vcvt.s32.f32 %v864
        %867 = vadd.xlane.f32.xlu0 %v865
        %v868 = vpop.xlane.xlu0 %867
        %869 = vadd.xlane.f32.xlu0 %v866
        %v870 = vpop.xlane.xlu0 %869
        %v871 = vcvt.f32.s32 %v868
        %v872 = vcvt.f32.s32 %v870
        %v873 = vshll.u32 %v872, 16
        %v874 = vadd.s32 %v873, %v871
        %vm875 = vcmp.ge.s32.totalorder %v874, %v847
        %v876 = vor.u32 %v845, 2097152
        %v877 = vsel %vm875, %v876, %v845
        %v878 = vsub.s32 %v847, %v874
        %v879 = vsel %vm875, %v847, %v878
        %v880 = vand.u32 %v534, 4292870144
        %v881 = vand.u32 %v535, 4292870144
        %vm882 = vcmp.eq.s32.totalorder %v880, %v877
        %vm883 = vcmp.eq.s32.totalorder %v881, %v877
        %v884 = vand.u32 %v534, 1048576
        %v885 = vand.u32 %v535, 1048576
        %vm886 = vcmp.ne.s32.totalorder %v884, 0
        %vm887 = vcmp.ne.s32.totalorder %v885, 0
        %vm888 = vmand %vm882, %vm886
        %vm889 = vmand %vm883, %vm887
        %v890 = vsel %vm888, 1, 0
        %v891 = vsel %vm889, 1, 0
        %v892 = vsel %vm542, %v890, 0
        %v893 = vsel %vm542, %v891, 0
        %v894 = vadd.s32 %v892, %v893
        %v895 = vand.u32 %v894, 65535
        %v896 = vshrl.u32 %v894, 16
        %v897 = vcvt.s32.f32 %v895
        %v898 = vcvt.s32.f32 %v896
        %899 = vadd.xlane.f32.xlu0 %v897
        %v900 = vpop.xlane.xlu0 %899
        %901 = vadd.xlane.f32.xlu0 %v898
        %v902 = vpop.xlane.xlu0 %901
        %v903 = vcvt.f32.s32 %v900
        %v904 = vcvt.f32.s32 %v902
        %v905 = vshll.u32 %v904, 16
        %v906 = vadd.s32 %v905, %v903
        %vm907 = vcmp.ge.s32.totalorder %v906, %v879
        %v908 = vor.u32 %v877, 1048576
        %v909 = vsel %vm907, %v908, %v877
        %v910 = vsub.s32 %v879, %v906
        %v911 = vsel %vm907, %v879, %v910
        %v912 = vand.u32 %v534, 4293918720
        %v913 = vand.u32 %v535, 4293918720
        %vm914 = vcmp.eq.s32.totalorder %v912, %v909
        %vm915 = vcmp.eq.s32.totalorder %v913, %v909
        %v916 = vand.u32 %v534, 524288
        %v917 = vand.u32 %v535, 524288
        %vm918 = vcmp.ne.s32.totalorder %v916, 0
        %vm919 = vcmp.ne.s32.totalorder %v917, 0
        %vm920 = vmand %vm914, %vm918
        %vm921 = vmand %vm915, %vm919
        %v922 = vsel %vm920, 1, 0
        %v923 = vsel %vm921, 1, 0
        %v924 = vsel %vm542, %v922, 0
        %v925 = vsel %vm542, %v923, 0
        %v926 = vadd.s32 %v924, %v925
        %v927 = vand.u32 %v926, 65535
        %v928 = vshrl.u32 %v926, 16
        %v929 = vcvt.s32.f32 %v927
        %v930 = vcvt.s32.f32 %v928
        %931 = vadd.xlane.f32.xlu0 %v929
        %v932 = vpop.xlane.xlu0 %931
        %933 = vadd.xlane.f32.xlu0 %v930
        %v934 = vpop.xlane.xlu0 %933
        %v935 = vcvt.f32.s32 %v932
        %v936 = vcvt.f32.s32 %v934
        %v937 = vshll.u32 %v936, 16
        %v938 = vadd.s32 %v937, %v935
        %vm939 = vcmp.ge.s32.totalorder %v938, %v911
        %v940 = vor.u32 %v909, 524288
        %v941 = vsel %vm939, %v940, %v909
        %v942 = vsub.s32 %v911, %v938
        %v943 = vsel %vm939, %v911, %v942
        %v944 = vand.u32 %v534, 4294443008
        %v945 = vand.u32 %v535, 4294443008
        %vm946 = vcmp.eq.s32.totalorder %v944, %v941
        %vm947 = vcmp.eq.s32.totalorder %v945, %v941
        %v948 = vand.u32 %v534, 262144
        %v949 = vand.u32 %v535, 262144
        %vm950 = vcmp.ne.s32.totalorder %v948, 0
        %vm951 = vcmp.ne.s32.totalorder %v949, 0
        %vm952 = vmand %vm946, %vm950
        %vm953 = vmand %vm947, %vm951
        %v954 = vsel %vm952, 1, 0
        %v955 = vsel %vm953, 1, 0
        %v956 = vsel %vm542, %v954, 0
        %v957 = vsel %vm542, %v955, 0
        %v958 = vadd.s32 %v956, %v957
        %v959 = vand.u32 %v958, 65535
        %v960 = vshrl.u32 %v958, 16
        %v961 = vcvt.s32.f32 %v959
        %v962 = vcvt.s32.f32 %v960
        %963 = vadd.xlane.f32.xlu0 %v961
        %v964 = vpop.xlane.xlu0 %963
        %965 = vadd.xlane.f32.xlu0 %v962
        %v966 = vpop.xlane.xlu0 %965
        %v967 = vcvt.f32.s32 %v964
        %v968 = vcvt.f32.s32 %v966
        %v969 = vshll.u32 %v968, 16
        %v970 = vadd.s32 %v969, %v967
        %vm971 = vcmp.ge.s32.totalorder %v970, %v943
        %v972 = vor.u32 %v941, 262144
        %v973 = vsel %vm971, %v972, %v941
        %v974 = vsub.s32 %v943, %v970
        %v975 = vsel %vm971, %v943, %v974
        %v976 = vand.u32 %v534, 4294705152
        %v977 = vand.u32 %v535, 4294705152
        %vm978 = vcmp.eq.s32.totalorder %v976, %v973
        %vm979 = vcmp.eq.s32.totalorder %v977, %v973
        %v980 = vand.u32 %v534, 131072
        %v981 = vand.u32 %v535, 131072
        %vm982 = vcmp.ne.s32.totalorder %v980, 0
        %vm983 = vcmp.ne.s32.totalorder %v981, 0
        %vm984 = vmand %vm978, %vm982
        %vm985 = vmand %vm979, %vm983
        %v986 = vsel %vm984, 1, 0
        %v987 = vsel %vm985, 1, 0
        %v988 = vsel %vm542, %v986, 0
        %v989 = vsel %vm542, %v987, 0
        %v990 = vadd.s32 %v988, %v989
        %v991 = vand.u32 %v990, 65535
        %v992 = vshrl.u32 %v990, 16
        %v993 = vcvt.s32.f32 %v991
        %v994 = vcvt.s32.f32 %v992
        %995 = vadd.xlane.f32.xlu0 %v993
        %v996 = vpop.xlane.xlu0 %995
        %997 = vadd.xlane.f32.xlu0 %v994
        %v998 = vpop.xlane.xlu0 %997
        %v999 = vcvt.f32.s32 %v996
        %v1000 = vcvt.f32.s32 %v998
        %v1001 = vshll.u32 %v1000, 16
        %v1002 = vadd.s32 %v1001, %v999
        %vm1003 = vcmp.ge.s32.totalorder %v1002, %v975
        %v1004 = vor.u32 %v973, 131072
        %v1005 = vsel %vm1003, %v1004, %v973
        %v1006 = vsub.s32 %v975, %v1002
        %v1007 = vsel %vm1003, %v975, %v1006
        %v1008 = vand.u32 %v534, 4294836224
        %v1009 = vand.u32 %v535, 4294836224
        %vm1010 = vcmp.eq.s32.totalorder %v1008, %v1005
        %vm1011 = vcmp.eq.s32.totalorder %v1009, %v1005
        %v1012 = vand.u32 %v534, 65536
        %v1013 = vand.u32 %v535, 65536
        %vm1014 = vcmp.ne.s32.totalorder %v1012, 0
        %vm1015 = vcmp.ne.s32.totalorder %v1013, 0
        %vm1016 = vmand %vm1010, %vm1014
        %vm1017 = vmand %vm1011, %vm1015
        %v1018 = vsel %vm1016, 1, 0
        %v1019 = vsel %vm1017, 1, 0
        %v1020 = vsel %vm542, %v1018, 0
        %v1021 = vsel %vm542, %v1019, 0
        %v1022 = vadd.s32 %v1020, %v1021
        %v1023 = vand.u32 %v1022, 65535
        %v1024 = vshrl.u32 %v1022, 16
        %v1025 = vcvt.s32.f32 %v1023
        %v1026 = vcvt.s32.f32 %v1024
        %1027 = vadd.xlane.f32.xlu0 %v1025
        %v1028 = vpop.xlane.xlu0 %1027
        %1029 = vadd.xlane.f32.xlu0 %v1026
        %v1030 = vpop.xlane.xlu0 %1029
        %v1031 = vcvt.f32.s32 %v1028
        %v1032 = vcvt.f32.s32 %v1030
        %v1033 = vshll.u32 %v1032, 16
        %v1034 = vadd.s32 %v1033, %v1031
        %vm1035 = vcmp.ge.s32.totalorder %v1034, %v1007
        %v1036 = vor.u32 %v1005, 65536
        %v1037 = vsel %vm1035, %v1036, %v1005
        %v1038 = vsub.s32 %v1007, %v1034
        %v1039 = vsel %vm1035, %v1007, %v1038
        %v1040 = vand.u32 %v534, 4294901760
        %v1041 = vand.u32 %v535, 4294901760
        %vm1042 = vcmp.eq.s32.totalorder %v1040, %v1037
        %vm1043 = vcmp.eq.s32.totalorder %v1041, %v1037
        %v1044 = vand.u32 %v534, 32768
        %v1045 = vand.u32 %v535, 32768
        %vm1046 = vcmp.ne.s32.totalorder %v1044, 0
        %vm1047 = vcmp.ne.s32.totalorder %v1045, 0
        %vm1048 = vmand %vm1042, %vm1046
        %vm1049 = vmand %vm1043, %vm1047
        %v1050 = vsel %vm1048, 1, 0
        %v1051 = vsel %vm1049, 1, 0
        %v1052 = vsel %vm542, %v1050, 0
        %v1053 = vsel %vm542, %v1051, 0
        %v1054 = vadd.s32 %v1052, %v1053
        %v1055 = vand.u32 %v1054, 65535
        %v1056 = vshrl.u32 %v1054, 16
        %v1057 = vcvt.s32.f32 %v1055
        %v1058 = vcvt.s32.f32 %v1056
        %1059 = vadd.xlane.f32.xlu0 %v1057
        %v1060 = vpop.xlane.xlu0 %1059
        %1061 = vadd.xlane.f32.xlu0 %v1058
        %v1062 = vpop.xlane.xlu0 %1061
        %v1063 = vcvt.f32.s32 %v1060
        %v1064 = vcvt.f32.s32 %v1062
        %v1065 = vshll.u32 %v1064, 16
        %v1066 = vadd.s32 %v1065, %v1063
        %vm1067 = vcmp.ge.s32.totalorder %v1066, %v1039
        %v1068 = vor.u32 %v1037, 32768
        %v1069 = vsel %vm1067, %v1068, %v1037
        %v1070 = vsub.s32 %v1039, %v1066
        %v1071 = vsel %vm1067, %v1039, %v1070
        %v1072 = vand.u32 %v534, 4294934528
        %v1073 = vand.u32 %v535, 4294934528
        %vm1074 = vcmp.eq.s32.totalorder %v1072, %v1069
        %vm1075 = vcmp.eq.s32.totalorder %v1073, %v1069
        %v1076 = vand.u32 %v534, 16384
        %v1077 = vand.u32 %v535, 16384
        %vm1078 = vcmp.ne.s32.totalorder %v1076, 0
        %vm1079 = vcmp.ne.s32.totalorder %v1077, 0
        %vm1080 = vmand %vm1074, %vm1078
        %vm1081 = vmand %vm1075, %vm1079
        %v1082 = vsel %vm1080, 1, 0
        %v1083 = vsel %vm1081, 1, 0
        %v1084 = vsel %vm542, %v1082, 0
        %v1085 = vsel %vm542, %v1083, 0
        %v1086 = vadd.s32 %v1084, %v1085
        %v1087 = vand.u32 %v1086, 65535
        %v1088 = vshrl.u32 %v1086, 16
        %v1089 = vcvt.s32.f32 %v1087
        %v1090 = vcvt.s32.f32 %v1088
        %1091 = vadd.xlane.f32.xlu0 %v1089
        %v1092 = vpop.xlane.xlu0 %1091
        %1093 = vadd.xlane.f32.xlu0 %v1090
        %v1094 = vpop.xlane.xlu0 %1093
        %v1095 = vcvt.f32.s32 %v1092
        %v1096 = vcvt.f32.s32 %v1094
        %v1097 = vshll.u32 %v1096, 16
        %v1098 = vadd.s32 %v1097, %v1095
        %vm1099 = vcmp.ge.s32.totalorder %v1098, %v1071
        %v1100 = vor.u32 %v1069, 16384
        %v1101 = vsel %vm1099, %v1100, %v1069
        %v1102 = vsub.s32 %v1071, %v1098
        %v1103 = vsel %vm1099, %v1071, %v1102
        %v1104 = vand.u32 %v534, 4294950912
        %v1105 = vand.u32 %v535, 4294950912
        %vm1106 = vcmp.eq.s32.totalorder %v1104, %v1101
        %vm1107 = vcmp.eq.s32.totalorder %v1105, %v1101
        %v1108 = vand.u32 %v534, 8192
        %v1109 = vand.u32 %v535, 8192
        %vm1110 = vcmp.ne.s32.totalorder %v1108, 0
        %vm1111 = vcmp.ne.s32.totalorder %v1109, 0
        %vm1112 = vmand %vm1106, %vm1110
        %vm1113 = vmand %vm1107, %vm1111
        %v1114 = vsel %vm1112, 1, 0
        %v1115 = vsel %vm1113, 1, 0
        %v1116 = vsel %vm542, %v1114, 0
        %v1117 = vsel %vm542, %v1115, 0
        %v1118 = vadd.s32 %v1116, %v1117
        %v1119 = vand.u32 %v1118, 65535
        %v1120 = vshrl.u32 %v1118, 16
        %v1121 = vcvt.s32.f32 %v1119
        %v1122 = vcvt.s32.f32 %v1120
        %1123 = vadd.xlane.f32.xlu0 %v1121
        %v1124 = vpop.xlane.xlu0 %1123
        %1125 = vadd.xlane.f32.xlu0 %v1122
        %v1126 = vpop.xlane.xlu0 %1125
        %v1127 = vcvt.f32.s32 %v1124
        %v1128 = vcvt.f32.s32 %v1126
        %v1129 = vshll.u32 %v1128, 16
        %v1130 = vadd.s32 %v1129, %v1127
        %vm1131 = vcmp.ge.s32.totalorder %v1130, %v1103
        %v1132 = vor.u32 %v1101, 8192
        %v1133 = vsel %vm1131, %v1132, %v1101
        %v1134 = vsub.s32 %v1103, %v1130
        %v1135 = vsel %vm1131, %v1103, %v1134
        %v1136 = vand.u32 %v534, 4294959104
        %v1137 = vand.u32 %v535, 4294959104
        %vm1138 = vcmp.eq.s32.totalorder %v1136, %v1133
        %vm1139 = vcmp.eq.s32.totalorder %v1137, %v1133
        %v1140 = vand.u32 %v534, 4096
        %v1141 = vand.u32 %v535, 4096
        %vm1142 = vcmp.ne.s32.totalorder %v1140, 0
        %vm1143 = vcmp.ne.s32.totalorder %v1141, 0
        %vm1144 = vmand %vm1138, %vm1142
        %vm1145 = vmand %vm1139, %vm1143
        %v1146 = vsel %vm1144, 1, 0
        %v1147 = vsel %vm1145, 1, 0
        %v1148 = vsel %vm542, %v1146, 0
        %v1149 = vsel %vm542, %v1147, 0
        %v1150 = vadd.s32 %v1148, %v1149
        %v1151 = vand.u32 %v1150, 65535
        %v1152 = vshrl.u32 %v1150, 16
        %v1153 = vcvt.s32.f32 %v1151
        %v1154 = vcvt.s32.f32 %v1152
        %1155 = vadd.xlane.f32.xlu0 %v1153
        %v1156 = vpop.xlane.xlu0 %1155
        %1157 = vadd.xlane.f32.xlu0 %v1154
        %v1158 = vpop.xlane.xlu0 %1157
        %v1159 = vcvt.f32.s32 %v1156
        %v1160 = vcvt.f32.s32 %v1158
        %v1161 = vshll.u32 %v1160, 16
        %v1162 = vadd.s32 %v1161, %v1159
        %vm1163 = vcmp.ge.s32.totalorder %v1162, %v1135
        %v1164 = vor.u32 %v1133, 4096
        %v1165 = vsel %vm1163, %v1164, %v1133
        %v1166 = vsub.s32 %v1135, %v1162
        %v1167 = vsel %vm1163, %v1135, %v1166
        %v1168 = vand.u32 %v534, 4294963200
        %v1169 = vand.u32 %v535, 4294963200
        %vm1170 = vcmp.eq.s32.totalorder %v1168, %v1165
        %vm1171 = vcmp.eq.s32.totalorder %v1169, %v1165
        %v1172 = vand.u32 %v534, 2048
        %v1173 = vand.u32 %v535, 2048
        %vm1174 = vcmp.ne.s32.totalorder %v1172, 0
        %vm1175 = vcmp.ne.s32.totalorder %v1173, 0
        %vm1176 = vmand %vm1170, %vm1174
        %vm1177 = vmand %vm1171, %vm1175
        %v1178 = vsel %vm1176, 1, 0
        %v1179 = vsel %vm1177, 1, 0
        %v1180 = vsel %vm542, %v1178, 0
        %v1181 = vsel %vm542, %v1179, 0
        %v1182 = vadd.s32 %v1180, %v1181
        %v1183 = vand.u32 %v1182, 65535
        %v1184 = vshrl.u32 %v1182, 16
        %v1185 = vcvt.s32.f32 %v1183
        %v1186 = vcvt.s32.f32 %v1184
        %1187 = vadd.xlane.f32.xlu0 %v1185
        %v1188 = vpop.xlane.xlu0 %1187
        %1189 = vadd.xlane.f32.xlu0 %v1186
        %v1190 = vpop.xlane.xlu0 %1189
        %v1191 = vcvt.f32.s32 %v1188
        %v1192 = vcvt.f32.s32 %v1190
        %v1193 = vshll.u32 %v1192, 16
        %v1194 = vadd.s32 %v1193, %v1191
        %vm1195 = vcmp.ge.s32.totalorder %v1194, %v1167
        %v1196 = vor.u32 %v1165, 2048
        %v1197 = vsel %vm1195, %v1196, %v1165
        %v1198 = vsub.s32 %v1167, %v1194
        %v1199 = vsel %vm1195, %v1167, %v1198
        %v1200 = vand.u32 %v534, 4294965248
        %v1201 = vand.u32 %v535, 4294965248
        %vm1202 = vcmp.eq.s32.totalorder %v1200, %v1197
        %vm1203 = vcmp.eq.s32.totalorder %v1201, %v1197
        %v1204 = vand.u32 %v534, 1024
        %v1205 = vand.u32 %v535, 1024
        %vm1206 = vcmp.ne.s32.totalorder %v1204, 0
        %vm1207 = vcmp.ne.s32.totalorder %v1205, 0
        %vm1208 = vmand %vm1202, %vm1206
        %vm1209 = vmand %vm1203, %vm1207
        %v1210 = vsel %vm1208, 1, 0
        %v1211 = vsel %vm1209, 1, 0
        %v1212 = vsel %vm542, %v1210, 0
        %v1213 = vsel %vm542, %v1211, 0
        %v1214 = vadd.s32 %v1212, %v1213
        %v1215 = vand.u32 %v1214, 65535
        %v1216 = vshrl.u32 %v1214, 16
        %v1217 = vcvt.s32.f32 %v1215
        %v1218 = vcvt.s32.f32 %v1216
        %1219 = vadd.xlane.f32.xlu0 %v1217
        %v1220 = vpop.xlane.xlu0 %1219
        %1221 = vadd.xlane.f32.xlu0 %v1218
        %v1222 = vpop.xlane.xlu0 %1221
        %v1223 = vcvt.f32.s32 %v1220
        %v1224 = vcvt.f32.s32 %v1222
        %v1225 = vshll.u32 %v1224, 16
        %v1226 = vadd.s32 %v1225, %v1223
        %vm1227 = vcmp.ge.s32.totalorder %v1226, %v1199
        %v1228 = vor.u32 %v1197, 1024
        %v1229 = vsel %vm1227, %v1228, %v1197
        %v1230 = vsub.s32 %v1199, %v1226
        %v1231 = vsel %vm1227, %v1199, %v1230
        %v1232 = vand.u32 %v534, 4294966272
        %v1233 = vand.u32 %v535, 4294966272
        %vm1234 = vcmp.eq.s32.totalorder %v1232, %v1229
        %vm1235 = vcmp.eq.s32.totalorder %v1233, %v1229
        %v1236 = vand.u32 %v534, 512
        %v1237 = vand.u32 %v535, 512
        %vm1238 = vcmp.ne.s32.totalorder %v1236, 0
        %vm1239 = vcmp.ne.s32.totalorder %v1237, 0
        %vm1240 = vmand %vm1234, %vm1238
        %vm1241 = vmand %vm1235, %vm1239
        %v1242 = vsel %vm1240, 1, 0
        %v1243 = vsel %vm1241, 1, 0
        %v1244 = vsel %vm542, %v1242, 0
        %v1245 = vsel %vm542, %v1243, 0
        %v1246 = vadd.s32 %v1244, %v1245
        %v1247 = vand.u32 %v1246, 65535
        %v1248 = vshrl.u32 %v1246, 16
        %v1249 = vcvt.s32.f32 %v1247
        %v1250 = vcvt.s32.f32 %v1248
        %1251 = vadd.xlane.f32.xlu0 %v1249
        %v1252 = vpop.xlane.xlu0 %1251
        %1253 = vadd.xlane.f32.xlu0 %v1250
        %v1254 = vpop.xlane.xlu0 %1253
        %v1255 = vcvt.f32.s32 %v1252
        %v1256 = vcvt.f32.s32 %v1254
        %v1257 = vshll.u32 %v1256, 16
        %v1258 = vadd.s32 %v1257, %v1255
        %vm1259 = vcmp.ge.s32.totalorder %v1258, %v1231
        %v1260 = vor.u32 %v1229, 512
        %v1261 = vsel %vm1259, %v1260, %v1229
        %v1262 = vsub.s32 %v1231, %v1258
        %v1263 = vsel %vm1259, %v1231, %v1262
        %v1264 = vand.u32 %v534, 4294966784
        %v1265 = vand.u32 %v535, 4294966784
        %vm1266 = vcmp.eq.s32.totalorder %v1264, %v1261
        %vm1267 = vcmp.eq.s32.totalorder %v1265, %v1261
        %v1268 = vand.u32 %v534, 256
        %v1269 = vand.u32 %v535, 256
        %vm1270 = vcmp.ne.s32.totalorder %v1268, 0
        %vm1271 = vcmp.ne.s32.totalorder %v1269, 0
        %vm1272 = vmand %vm1266, %vm1270
        %vm1273 = vmand %vm1267, %vm1271
        %v1274 = vsel %vm1272, 1, 0
        %v1275 = vsel %vm1273, 1, 0
        %v1276 = vsel %vm542, %v1274, 0
        %v1277 = vsel %vm542, %v1275, 0
        %v1278 = vadd.s32 %v1276, %v1277
        %v1279 = vand.u32 %v1278, 65535
        %v1280 = vshrl.u32 %v1278, 16
        %v1281 = vcvt.s32.f32 %v1279
        %v1282 = vcvt.s32.f32 %v1280
        %1283 = vadd.xlane.f32.xlu0 %v1281
        %v1284 = vpop.xlane.xlu0 %1283
        %1285 = vadd.xlane.f32.xlu0 %v1282
        %v1286 = vpop.xlane.xlu0 %1285
        %v1287 = vcvt.f32.s32 %v1284
        %v1288 = vcvt.f32.s32 %v1286
        %v1289 = vshll.u32 %v1288, 16
        %v1290 = vadd.s32 %v1289, %v1287
        %vm1291 = vcmp.ge.s32.totalorder %v1290, %v1263
        %v1292 = vor.u32 %v1261, 256
        %v1293 = vsel %vm1291, %v1292, %v1261
        %v1294 = vsub.s32 %v1263, %v1290
        %v1295 = vsel %vm1291, %v1263, %v1294
        %v1296 = vand.u32 %v534, 4294967040
        %v1297 = vand.u32 %v535, 4294967040
        %vm1298 = vcmp.eq.s32.totalorder %v1296, %v1293
        %vm1299 = vcmp.eq.s32.totalorder %v1297, %v1293
        %v1300 = vand.u32 %v534, 128
        %v1301 = vand.u32 %v535, 128
        %vm1302 = vcmp.ne.s32.totalorder %v1300, 0
        %vm1303 = vcmp.ne.s32.totalorder %v1301, 0
        %vm1304 = vmand %vm1298, %vm1302
        %vm1305 = vmand %vm1299, %vm1303
        %v1306 = vsel %vm1304, 1, 0
        %v1307 = vsel %vm1305, 1, 0
        %v1308 = vsel %vm542, %v1306, 0
        %v1309 = vsel %vm542, %v1307, 0
        %v1310 = vadd.s32 %v1308, %v1309
        %v1311 = vand.u32 %v1310, 65535
        %v1312 = vshrl.u32 %v1310, 16
        %v1313 = vcvt.s32.f32 %v1311
        %v1314 = vcvt.s32.f32 %v1312
        %1315 = vadd.xlane.f32.xlu0 %v1313
        %v1316 = vpop.xlane.xlu0 %1315
        %1317 = vadd.xlane.f32.xlu0 %v1314
        %v1318 = vpop.xlane.xlu0 %1317
        %v1319 = vcvt.f32.s32 %v1316
        %v1320 = vcvt.f32.s32 %v1318
        %v1321 = vshll.u32 %v1320, 16
        %v1322 = vadd.s32 %v1321, %v1319
        %vm1323 = vcmp.ge.s32.totalorder %v1322, %v1295
        %v1324 = vor.u32 %v1293, 128
        %v1325 = vsel %vm1323, %v1324, %v1293
        %v1326 = vsub.s32 %v1295, %v1322
        %v1327 = vsel %vm1323, %v1295, %v1326
        %v1328 = vand.u32 %v534, 4294967168
        %v1329 = vand.u32 %v535, 4294967168
        %vm1330 = vcmp.eq.s32.totalorder %v1328, %v1325
        %vm1331 = vcmp.eq.s32.totalorder %v1329, %v1325
        %v1332 = vand.u32 %v534, 64
        %v1333 = vand.u32 %v535, 64
        %vm1334 = vcmp.ne.s32.totalorder %v1332, 0
        %vm1335 = vcmp.ne.s32.totalorder %v1333, 0
        %vm1336 = vmand %vm1330, %vm1334
        %vm1337 = vmand %vm1331, %vm1335
        %v1338 = vsel %vm1336, 1, 0
        %v1339 = vsel %vm1337, 1, 0
        %v1340 = vsel %vm542, %v1338, 0
        %v1341 = vsel %vm542, %v1339, 0
        %v1342 = vadd.s32 %v1340, %v1341
        %v1343 = vand.u32 %v1342, 65535
        %v1344 = vshrl.u32 %v1342, 16
        %v1345 = vcvt.s32.f32 %v1343
        %v1346 = vcvt.s32.f32 %v1344
        %1347 = vadd.xlane.f32.xlu0 %v1345
        %v1348 = vpop.xlane.xlu0 %1347
        %1349 = vadd.xlane.f32.xlu0 %v1346
        %v1350 = vpop.xlane.xlu0 %1349
        %v1351 = vcvt.f32.s32 %v1348
        %v1352 = vcvt.f32.s32 %v1350
        %v1353 = vshll.u32 %v1352, 16
        %v1354 = vadd.s32 %v1353, %v1351
        %vm1355 = vcmp.ge.s32.totalorder %v1354, %v1327
        %v1356 = vor.u32 %v1325, 64
        %v1357 = vsel %vm1355, %v1356, %v1325
        %v1358 = vsub.s32 %v1327, %v1354
        %v1359 = vsel %vm1355, %v1327, %v1358
        %v1360 = vand.u32 %v534, 4294967232
        %v1361 = vand.u32 %v535, 4294967232
        %vm1362 = vcmp.eq.s32.totalorder %v1360, %v1357
        %vm1363 = vcmp.eq.s32.totalorder %v1361, %v1357
        %v1364 = vand.u32 %v534, 32
        %v1365 = vand.u32 %v535, 32
        %vm1366 = vcmp.ne.s32.totalorder %v1364, 0
        %vm1367 = vcmp.ne.s32.totalorder %v1365, 0
        %vm1368 = vmand %vm1362, %vm1366
        %vm1369 = vmand %vm1363, %vm1367
        %v1370 = vsel %vm1368, 1, 0
        %v1371 = vsel %vm1369, 1, 0
        %v1372 = vsel %vm542, %v1370, 0
        %v1373 = vsel %vm542, %v1371, 0
        %v1374 = vadd.s32 %v1372, %v1373
        %v1375 = vand.u32 %v1374, 65535
        %v1376 = vshrl.u32 %v1374, 16
        %v1377 = vcvt.s32.f32 %v1375
        %v1378 = vcvt.s32.f32 %v1376
        %1379 = vadd.xlane.f32.xlu0 %v1377
        %v1380 = vpop.xlane.xlu0 %1379
        %1381 = vadd.xlane.f32.xlu0 %v1378
        %v1382 = vpop.xlane.xlu0 %1381
        %v1383 = vcvt.f32.s32 %v1380
        %v1384 = vcvt.f32.s32 %v1382
        %v1385 = vshll.u32 %v1384, 16
        %v1386 = vadd.s32 %v1385, %v1383
        %vm1387 = vcmp.ge.s32.totalorder %v1386, %v1359
        %v1388 = vor.u32 %v1357, 32
        %v1389 = vsel %vm1387, %v1388, %v1357
        %v1390 = vsub.s32 %v1359, %v1386
        %v1391 = vsel %vm1387, %v1359, %v1390
        %v1392 = vand.u32 %v534, 4294967264
        %v1393 = vand.u32 %v535, 4294967264
        %vm1394 = vcmp.eq.s32.totalorder %v1392, %v1389
        %vm1395 = vcmp.eq.s32.totalorder %v1393, %v1389
        %v1396 = vand.u32 %v534, 16
        %v1397 = vand.u32 %v535, 16
        %vm1398 = vcmp.ne.s32.totalorder %v1396, 0
        %vm1399 = vcmp.ne.s32.totalorder %v1397, 0
        %vm1400 = vmand %vm1394, %vm1398
        %vm1401 = vmand %vm1395, %vm1399
        %v1402 = vsel %vm1400, 1, 0
        %v1403 = vsel %vm1401, 1, 0
        %v1404 = vsel %vm542, %v1402, 0
        %v1405 = vsel %vm542, %v1403, 0
        %v1406 = vadd.s32 %v1404, %v1405
        %v1407 = vand.u32 %v1406, 65535
        %v1408 = vshrl.u32 %v1406, 16
        %v1409 = vcvt.s32.f32 %v1407
        %v1410 = vcvt.s32.f32 %v1408
        %1411 = vadd.xlane.f32.xlu0 %v1409
        %v1412 = vpop.xlane.xlu0 %1411
        %1413 = vadd.xlane.f32.xlu0 %v1410
        %v1414 = vpop.xlane.xlu0 %1413
        %v1415 = vcvt.f32.s32 %v1412
        %v1416 = vcvt.f32.s32 %v1414
        %v1417 = vshll.u32 %v1416, 16
        %v1418 = vadd.s32 %v1417, %v1415
        %vm1419 = vcmp.ge.s32.totalorder %v1418, %v1391
        %v1420 = vor.u32 %v1389, 16
        %v1421 = vsel %vm1419, %v1420, %v1389
        %v1422 = vsub.s32 %v1391, %v1418
        %v1423 = vsel %vm1419, %v1391, %v1422
        %v1424 = vand.u32 %v534, 4294967280
        %v1425 = vand.u32 %v535, 4294967280
        %vm1426 = vcmp.eq.s32.totalorder %v1424, %v1421
        %vm1427 = vcmp.eq.s32.totalorder %v1425, %v1421
        %v1428 = vand.u32 %v534, 8
        %v1429 = vand.u32 %v535, 8
        %vm1430 = vcmp.ne.s32.totalorder %v1428, 0
        %vm1431 = vcmp.ne.s32.totalorder %v1429, 0
        %vm1432 = vmand %vm1426, %vm1430
        %vm1433 = vmand %vm1427, %vm1431
        %v1434 = vsel %vm1432, 1, 0
        %v1435 = vsel %vm1433, 1, 0
        %v1436 = vsel %vm542, %v1434, 0
        %v1437 = vsel %vm542, %v1435, 0
        %v1438 = vadd.s32 %v1436, %v1437
        %v1439 = vand.u32 %v1438, 65535
        %v1440 = vshrl.u32 %v1438, 16
        %v1441 = vcvt.s32.f32 %v1439
        %v1442 = vcvt.s32.f32 %v1440
        %1443 = vadd.xlane.f32.xlu0 %v1441
        %v1444 = vpop.xlane.xlu0 %1443
        %1445 = vadd.xlane.f32.xlu0 %v1442
        %v1446 = vpop.xlane.xlu0 %1445
        %v1447 = vcvt.f32.s32 %v1444
        %v1448 = vcvt.f32.s32 %v1446
        %v1449 = vshll.u32 %v1448, 16
        %v1450 = vadd.s32 %v1449, %v1447
        %vm1451 = vcmp.ge.s32.totalorder %v1450, %v1423
        %v1452 = vor.u32 %v1421, 8
        %v1453 = vsel %vm1451, %v1452, %v1421
        %v1454 = vsub.s32 %v1423, %v1450
        %v1455 = vsel %vm1451, %v1423, %v1454
        %v1456 = vand.u32 %v534, 4294967288
        %v1457 = vand.u32 %v535, 4294967288
        %vm1458 = vcmp.eq.s32.totalorder %v1456, %v1453
        %vm1459 = vcmp.eq.s32.totalorder %v1457, %v1453
        %v1460 = vand.u32 %v534, 4
        %v1461 = vand.u32 %v535, 4
        %vm1462 = vcmp.ne.s32.totalorder %v1460, 0
        %vm1463 = vcmp.ne.s32.totalorder %v1461, 0
        %vm1464 = vmand %vm1458, %vm1462
        %vm1465 = vmand %vm1459, %vm1463
        %v1466 = vsel %vm1464, 1, 0
        %v1467 = vsel %vm1465, 1, 0
        %v1468 = vsel %vm542, %v1466, 0
        %v1469 = vsel %vm542, %v1467, 0
        %v1470 = vadd.s32 %v1468, %v1469
        %v1471 = vand.u32 %v1470, 65535
        %v1472 = vshrl.u32 %v1470, 16
        %v1473 = vcvt.s32.f32 %v1471
        %v1474 = vcvt.s32.f32 %v1472
        %1475 = vadd.xlane.f32.xlu0 %v1473
        %v1476 = vpop.xlane.xlu0 %1475
        %1477 = vadd.xlane.f32.xlu0 %v1474
        %v1478 = vpop.xlane.xlu0 %1477
        %v1479 = vcvt.f32.s32 %v1476
        %v1480 = vcvt.f32.s32 %v1478
        %v1481 = vshll.u32 %v1480, 16
        %v1482 = vadd.s32 %v1481, %v1479
        %vm1483 = vcmp.ge.s32.totalorder %v1482, %v1455
        %v1484 = vor.u32 %v1453, 4
        %v1485 = vsel %vm1483, %v1484, %v1453
        %v1486 = vsub.s32 %v1455, %v1482
        %v1487 = vsel %vm1483, %v1455, %v1486
        %v1488 = vand.u32 %v534, 4294967292
        %v1489 = vand.u32 %v535, 4294967292
        %vm1490 = vcmp.eq.s32.totalorder %v1488, %v1485
        %vm1491 = vcmp.eq.s32.totalorder %v1489, %v1485
        %v1492 = vand.u32 %v534, 2
        %v1493 = vand.u32 %v535, 2
        %vm1494 = vcmp.ne.s32.totalorder %v1492, 0
        %vm1495 = vcmp.ne.s32.totalorder %v1493, 0
        %vm1496 = vmand %vm1490, %vm1494
        %vm1497 = vmand %vm1491, %vm1495
        %v1498 = vsel %vm1496, 1, 0
        %v1499 = vsel %vm1497, 1, 0
        %v1500 = vsel %vm542, %v1498, 0
        %v1501 = vsel %vm542, %v1499, 0
        %v1502 = vadd.s32 %v1500, %v1501
        %v1503 = vand.u32 %v1502, 65535
        %v1504 = vshrl.u32 %v1502, 16
        %v1505 = vcvt.s32.f32 %v1503
        %v1506 = vcvt.s32.f32 %v1504
        %1507 = vadd.xlane.f32.xlu0 %v1505
        %v1508 = vpop.xlane.xlu0 %1507
        %1509 = vadd.xlane.f32.xlu0 %v1506
        %v1510 = vpop.xlane.xlu0 %1509
        %v1511 = vcvt.f32.s32 %v1508
        %v1512 = vcvt.f32.s32 %v1510
        %v1513 = vshll.u32 %v1512, 16
        %v1514 = vadd.s32 %v1513, %v1511
        %vm1515 = vcmp.ge.s32.totalorder %v1514, %v1487
        %v1516 = vor.u32 %v1485, 2
        %v1517 = vsel %vm1515, %v1516, %v1485
        %v1518 = vsub.s32 %v1487, %v1514
        %v1519 = vsel %vm1515, %v1487, %v1518
        %v1520 = vand.u32 %v534, 4294967294
        %v1521 = vand.u32 %v535, 4294967294
        %vm1522 = vcmp.eq.s32.totalorder %v1520, %v1517
        %vm1523 = vcmp.eq.s32.totalorder %v1521, %v1517
        %v1524 = vand.u32 %v534, 1
        %v1525 = vand.u32 %v535, 1
        %vm1526 = vcmp.ne.s32.totalorder %v1524, 0
        %vm1527 = vcmp.ne.s32.totalorder %v1525, 0
        %vm1528 = vmand %vm1522, %vm1526
        %vm1529 = vmand %vm1523, %vm1527
        %v1530 = vsel %vm1528, 1, 0
        %v1531 = vsel %vm1529, 1, 0
        %v1532 = vsel %vm542, %v1530, 0
        %v1533 = vsel %vm542, %v1531, 0
        %v1534 = vadd.s32 %v1532, %v1533
        %v1535 = vand.u32 %v1534, 65535
        %v1536 = vshrl.u32 %v1534, 16
        %v1537 = vcvt.s32.f32 %v1535
        %v1538 = vcvt.s32.f32 %v1536
        %1539 = vadd.xlane.f32.xlu0 %v1537
        %v1540 = vpop.xlane.xlu0 %1539
        %1541 = vadd.xlane.f32.xlu0 %v1538
        %v1542 = vpop.xlane.xlu0 %1541
        %v1543 = vcvt.f32.s32 %v1540
        %v1544 = vcvt.f32.s32 %v1542
        %v1545 = vshll.u32 %v1544, 16
        %v1546 = vadd.s32 %v1545, %v1543
        %vm1547 = vcmp.ge.s32.totalorder %v1546, %v1519
        %v1548 = vor.u32 %v1517, 1
        %v1549 = vsel %vm1547, %v1548, %v1517
        %vm1550 = vcmp.lt.s32.totalorder %v1549, 0
        %v1551 = vand.u32 %v1549, 2147483647
        %v1552 = vxor.u32 %v1549, 4294967295
        %v1553 = vsel %vm1550, %v1551, %v1552
        %vm1555 = vcmp.ge.f32.partialorder %v520, %v1553
        %vm1556 = vcmp.ge.f32.partialorder %v522, %v1553
        %vm1557 = vmpackc.low %vm1555, %vm1555
        %vm1558 = vmpackc.even %vm1557, %vm1557
        %vm1559 = vmpackc.low %vm1556, %vm1556
        %vm1560 = vmpackc.even %vm1559, %vm1559
        %v1561 = vsel %vm1558, 16843009, 0
        %v1562 = vsel %vm1560, 16843009, 0
        %v1563 = vcombine.low %v1561, %v1562
        %v1565 = vunpack.c.l.s4 1966171168
        %v1566 = vunpack.c.0.s8 %v1565
        %v1567 = vlaneseq
        %v1568 = vshrl.u32 %v1567, 7
        %v1569 = vsub.s32 %v1566, %v1568
        %v1570 = vrot.slane %v1563, %v1569
        %v1572 = vunpack.c.l.s4 1966171168
        %v1573 = vunpack.c.0.s8 %v1572
        %v1574 = vlaneseq
        %v1575 = vshrl.u32 %v1574, 7
        %v1576 = vsub.s32 %v1573, %v1575
        %v1577 = vrot.slane %v1570, %v1576
        %vm1578 = vcmask 1040384
        %vm1579 = vsmask.f32 256
        %vm1580 = vmand %vm1578, %vm1579
        %vm1581 = vcmask 1041409
        %vm1582 = vsmask.f32 1280
        %vm1583 = vmand %vm1581, %vm1582
        %vm1584 = vmor %vm1583, %vm1580
        %v1585 = vld [vmem:[%s304] sm:$0x3]
        %v1586 = vsel %vm1584, %v1577, %v1585
        %1587 = vst [vmem:[%s304] sm:$0x3] %v1586
        %p1588 = scmp.lt.s32.totalorder %s18, 3
        %s1589 = scalar_select %p1588, %s18, 3
        %s1590 = smul.addr %s1589, 2
        %s1591 = scalar_lea.vmem %s5, %s1590
        // Predicated region
        $region57: #{tpu_custom_call.1} parent=39 // pred_check
          %p1592 = pneg %p151
        $region58: #{tpu_custom_call.1} parent=39 // pred_check_branch
          %1594 = sbr.rel (%p1592) target = $region60
        $region59: #{tpu_custom_call.1} parent=39 // pred_region
          _
        $region60: #{tpu_custom_call.1} parent=39 // pred_fallthru
          _
      $region40: #{tpu_custom_call.1} parent=5 // pred_fallthru
        _
      %p1595 = scmp.le.s32.totalorder 2, %s13
      // Predicated region
      $region61: #{tpu_custom_call.1} parent=5 // pred_check
        %p1596 = pneg %p1595
      $region62: #{tpu_custom_call.1} parent=5 // pred_check_branch
        %1598 = sbr.rel (%p1596) target = $region64
      $region63: #{tpu_custom_call.1} parent=5 // pred_region
        %s1599 = ssub.s32 %s13, 2
        // Predicated region
        $region65: #{tpu_custom_call.1} parent=63 // pred_check
          %p1600 = pneg %p157
        $region66: #{tpu_custom_call.1} parent=63 // pred_check_branch
          %1602 = sbr.rel (%p1600) target = $region68
        $region67: #{tpu_custom_call.1} parent=63 // pred_region
          %p1603 = scmp.lt.s32.totalorder %s19, 3
          %s1604 = scalar_select %p1603, %s19, 3
          %s1605 = smul.addr %s1604, 2
          %s1606 = scalar_lea.vmem %s5, %s1605
        $region68: #{tpu_custom_call.1} parent=63 // pred_fallthru
          _
      $region64: #{tpu_custom_call.1} parent=5 // pred_fallthru
        _
    $region6: #{tpu_custom_call.1} parent=1 // loop_footer
      %s17 = sadd.s32 1, %s13
    $region7: #{tpu_custom_call.1} parent=1 // loop_footer_branch
      %12 = sbr.rel target = $region3
    $region8: #{tpu_custom_call.1} parent=1 // loop_exit
      _
    %1607 = vsyncpa [#allocation3], 1
    %s1608 = scalar_lea.sflag [#allocation3], 1
    %1609 = vsyncpa %s1608, 1
    %1610 = vsyncpa [#allocation5], 1

</llo_original>
